<compile_context>
chip_gen: v5e
topology: v5e:2x2
jax: 0.10.0
libtpu: 0.0.40
codegen_flags: <defaults>
</compile_context>

<pallas_src>
from functools import partial

import jax
import jax.numpy as jnp
from jax.experimental import pallas as pl
from jax.experimental.pallas import tpu as pltpu

N = 26
INPUT_SIZE = N + 1   # 27
LANE = 128
T_CHUNK = 128        # time steps per grid iteration (bounds VMEM independent of T)


def _round_up(v, m):
    return (v + m - 1) // m * m


def _num_tensorcores():
    """TensorCores a single kernel can span: 2 on v7x (and megacore v4/v5p),
    1 on v5e/v6e.  Splitting the batch onto a 'parallel' grid axis only pays
    when a second core exists; on a single-TC chip it just doubles the serial
    per-step matmul chain."""
    try:
        kind = jax.devices()[0].device_kind.lower()
    except Exception:
        return 1
    return 2 if any(t in kind for t in ("v7", "7x", "v4", "v5p")) else 1


# ----------------------------------------------------------------------------
# Pallas kernel: ONLY the serial recurrence (the part XLA cannot parallelize).
# Grid = (batch blocks [parallel], time chunks [arbitrary, serial]).
# ----------------------------------------------------------------------------
def _gru_recurrence_kernel(gi_ref,     # (Tc, bb, 3*Hp) f32  x-projection (+ fused biases), time-major
                           wh_ref,     # (Hp, 3*Hp)     bf16 fused recurrent weights [r | z | n]
                           bhn_ref,    # (1, Hp)        f32  hidden-side n-gate bias (r-gated => separate)
                           h_out_ref,  # (Tc, bb, Hp)        hidden state per step (lane-dense)
                           h_ref):     # (bb, Hp)       f32  carried hidden state (persists across chunks)
    tc = pl.program_id(1)

    @pl.when(tc == 0)
    def _():
        h_ref[...] = jnp.zeros_like(h_ref)

    Tc = gi_ref.shape[0]
    bb, Hp = h_ref.shape

    wh = wh_ref[...]                                      # hoisted out of the loop
    bhn_b = jnp.broadcast_to(bhn_ref[...], (bb, Hp))      # hoisted: JAX doesn't CSE broadcast_in_dim

    def step(t, h):
        gi = gi_ref[t]                                                         # (bb, 3*Hp)
        # ONE MXU matmul per step; bf16 operands (single pass), f32 accumulate.
        gh = jnp.dot(h.astype(jnp.bfloat16), wh, preferred_element_type=jnp.float32)
        r = jax.nn.sigmoid(gi[:, :Hp] + gh[:, :Hp])
        z = jax.nn.sigmoid(gi[:, Hp:2 * Hp] + gh[:, Hp:2 * Hp])
        n = jnp.tanh(gi[:, 2 * Hp:] + r * (gh[:, 2 * Hp:] + bhn_b))
        h_new = n + z * (h - n)                      # == (1-z)*n + z*h, one fewer VALU op on the chain
        h_out_ref[t] = h_new.astype(h_out_ref.dtype)
        return h_new

    # Unroll the visible serial loop so the LLO scheduler can hide gi loads /
    # h_out stores under the matmul + EUP (sigmoid/tanh) chain.
    if Tc <= 8:
        unroll = True
    elif Tc % 8 == 0:
        unroll = 8
    elif Tc % 4 == 0:
        unroll = 4
    else:
        unroll = 2 if Tc % 2 == 0 else 1

    # TODO(synk): weight-stationary MXU driving (pltpu.matmul_push_rhs once,
    # matmul_acc_lhs/matmul_pop per step) would avoid re-streaming the
    # loop-invariant RHS every iteration; needs per-128-lane-tile handling of
    # the 3*Hp gate block, left out here to keep lowering simple and portable.
    h_final = jax.lax.fori_loop(0, Tc, step, h_ref[...], unroll=unroll)
    h_ref[...] = h_final


# ----------------------------------------------------------------------------
# Wrapper: hoisted input projection -> kernel recurrence -> deferred head.
# ----------------------------------------------------------------------------
@partial(jax.jit, static_argnames=("onehot_input",))
def gru_memory_forward(x, kp, onehot_input=True):
    """x: (B, T, 27) float32 one-hot. kp: packed params (see pack_params).
    Returns logits (B, T, 27), matching torch GRU(batch_first=True)+Linear."""
    B, T, _ = x.shape
    Hp = kp["wh"].shape[0]
    G = 3 * Hp

    # Hoisted input projection (off the serial chain), emitted time-major.
    if onehot_input:
        # x is one-hot (idx_to_onehot): x @ W_i is exactly a row-gather of W_i.
        idx = jnp.argmax(x, axis=-1).astype(jnp.int32)          # (B, T)
        gi = jnp.take(kp["wi"], idx.T, axis=0) + kp["bg"]       # (T, B, 3*Hp)
    else:
        gi = jnp.einsum("bti,ig->tbg", x, kp["wi"]) + kp["bg"]  # general path

    # Batch blocking: split only when a 2nd TensorCore exists (v7x / megacore).
    n_tc = _num_tensorcores()
    if n_tc >= 2 and B >= 16:
        Bp = _round_up(B, 16)     # pad so both cores always engage
        bb = Bp // 2              # 8-sublane-aligned blocks
    else:
        Bp, bb = B, B             # single TC: one block, serial chain length T

    # Time chunking: bounds VMEM independent of T; chunks pipeline via BlockSpec.
    Tc = min(T, T_CHUNK)
    Tp = _round_up(T, Tc)

    if (Tp, Bp) != (T, B):
        gi = jnp.pad(gi, ((0, Tp - T), (0, Bp - B), (0, 0)))

    n_b, n_t = Bp // bb, Tp // Tc

    # bf16 hidden-state writeback only when the batch block is sublane-aligned.
    out_dtype = jnp.bfloat16 if bb >= 16 else jnp.float32

    # Explicit scoped-VMEM limit computed from the block sizes (+2x headroom).
    vmem_bytes = (2 * Tc * bb * G * 4                                   # gi, double-buffered, f32
                  + 2 * Tc * bb * Hp * jnp.dtype(out_dtype).itemsize    # h_out, double-buffered
                  + 2 * (Hp * G * 2 + Hp * 4)                           # wh (bf16) + bhn
                  + bb * Hp * 4)                                        # h scratch
    vmem_limit = int(min(max(2 * vmem_bytes, 16 << 20), 48 << 20))

    h_states = pl.pallas_call(
        _gru_recurrence_kernel,
        out_shape=jax.ShapeDtypeStruct((Tp, Bp, Hp), out_dtype),
        grid_spec=pltpu.PrefetchScalarGridSpec(
            num_scalar_prefetch=0,
            grid=(n_b, n_t),
            in_specs=[
                pl.BlockSpec((Tc, bb, G), lambda g, t: (t, g, 0)),   # gi chunk
                pl.BlockSpec((Hp, G), lambda g, t: (0, 0)),          # W_h fused (bf16)
                pl.BlockSpec((1, Hp), lambda g, t: (0, 0)),          # b_hn
            ],
            out_specs=pl.BlockSpec((Tc, bb, Hp), lambda g, t: (t, g, 0)),
            scratch_shapes=[pltpu.VMEM((bb, Hp), jnp.float32)],      # carried h
        ),
        compiler_params=pltpu.CompilerParams(
            dimension_semantics=("parallel", "arbitrary"),
            vmem_limit_bytes=vmem_limit),
    )(gi, kp["wh"], kp["bhn"])

    # Deferred Linear head: one (T*B, Hp) x (Hp, 27) matmul; padded rows dropped,
    # layout change folded into the einsum (no transpose op).
    h_valid = h_states[:T, :B]
    logits = jnp.einsum("tbh,hv->btv", h_valid, kp["wl"]) + kp["bl"]
    return logits


# ----------------------------------------------------------------------------
# Parameters
# ----------------------------------------------------------------------------
def init_params(key, hidden_size):
    """Raw per-gate params matching torch.nn.GRU/Linear shapes & default init
    U(-1/sqrt(H), 1/sqrt(H)); stored pre-transposed as (in, out) for x @ W."""
    H, I = hidden_size, INPUT_SIZE
    k = 1.0 / jnp.sqrt(jnp.float32(H))
    keys = jax.random.split(key, 14)
    u = lambda kk, shape: jax.random.uniform(kk, shape, jnp.float32, -k, k)
    return {
        "wir": u(keys[0], (I, H)), "wiz": u(keys[1], (I, H)), "win": u(keys[2], (I, H)),
        "whr": u(keys[3], (H, H)), "whz": u(keys[4], (H, H)), "whn": u(keys[5], (H, H)),
        "bir": u(keys[6], (1, H)), "biz": u(keys[7], (1, H)), "bin": u(keys[8], (1, H)),
        "bhr": u(keys[9], (1, H)), "bhz": u(keys[10], (1, H)), "bhn": u(keys[11], (1, H)),
        "wl": u(keys[12], (H, I)), "bl": u(keys[13], (1, I)),
    }


def pack_params(p):
    """Fuse gate weights [r | z | n], zero-pad hidden dim to 128 lanes, and
    store the recurrent weights in bfloat16 (elementwise math stays f32).
    Padded hidden units stay exactly 0 (sigmoid(0)=.5, tanh(0)=0, h0=0) since
    all padded weight/bias entries — including bhn and the bf16 wh — are 0."""
    H = p["whr"].shape[0]
    Hp = _round_up(H, LANE)

    pad_c = lambda a: jnp.pad(a, ((0, 0), (0, Hp - a.shape[1])))
    pad_r = lambda a: jnp.pad(a, ((0, Hp - a.shape[0]), (0, 0)))

    wi = jnp.concatenate([pad_c(p["wir"]), pad_c(p["wiz"]), pad_c(p["win"])], axis=1)          # (I, 3*Hp) f32
    wh = pad_r(jnp.concatenate([pad_c(p["whr"]), pad_c(p["whz"]), pad_c(p["whn"])],
                               axis=1)).astype(jnp.bfloat16)                                   # (Hp, 3*Hp) bf16
    # r/z biases merge (ih+hh); the hh n-gate bias stays separate (r-gated).
    bg = jnp.concatenate([pad_c(p["bir"] + p["bhr"]),
                          pad_c(p["biz"] + p["bhz"]),
                          pad_c(p["bin"])], axis=1)                                            # (1, 3*Hp) f32
    bhn = pad_c(p["bhn"])                                                                      # (1, Hp)   f32
    wl = pad_r(p["wl"])                                                                        # (Hp, 27)  f32
    bl = p["bl"]                                                                               # (1, 27)   f32
    return {"wi": wi, "wh": wh, "bg": bg, "bhn": bhn, "wl": wl, "bl": bl}


# ----------------------------------------------------------------------------
# Pure-JAX reference (mirrors torch.nn.GRU + Linear) for verification.
# ----------------------------------------------------------------------------
def reference_forward(x, p):
    B, T, _ = x.shape
    H = p["whr"].shape[0]

    def step(h, x_t):
        r = jax.nn.sigmoid(x_t @ p["wir"] + p["bir"] + h @ p["whr"] + p["bhr"])
        z = jax.nn.sigmoid(x_t @ p["wiz"] + p["biz"] + h @ p["whz"] + p["bhz"])
        n = jnp.tanh(x_t @ p["win"] + p["bin"] + r * (h @ p["whn"] + p["bhn"]))
        h_new = (1.0 - z) * n + z * h
        return h_new, h_new @ p["wl"] + p["bl"]

    h0 = jnp.zeros((B, H), jnp.float32)
    _, outs = jax.lax.scan(step, h0, jnp.transpose(x, (1, 0, 2)))
    return jnp.transpose(outs, (1, 0, 2))


if __name__ == "__main__":
    B, T, H = 2, 8, 32
    key = jax.random.PRNGKey(0)
    k_x, k_p = jax.random.split(key)

    # One-hot input (B, T, 27), same as idx_to_onehot output fed to forward().
    idx = jax.random.randint(k_x, (B, T), 1, N + 1)
    x = jax.nn.one_hot(idx, INPUT_SIZE, dtype=jnp.float32)

    raw = init_params(k_p, H)
    kp = pack_params(raw)

    logits = gru_memory_forward(x, kp)
    jax.block_until_ready(logits)

    ref = reference_forward(x, raw)
    assert logits.shape == (B, T, INPUT_SIZE)
    # bf16 MXU operands in the recurrence => slightly looser tolerance than pure-f32.
    assert jnp.allclose(logits, ref, atol=3e-2, rtol=3e-2), "mismatch vs reference"

    print("KERNEL_OK")
</pallas_src>

<mosaic_0001>
module attributes {stable_mosaic.version = 11 : i64} {
  func.func @_gru_recurrence_kernel(%arg0: i32, %arg1: i32, %arg2: memref<8x2x384xf32, #tpu.memory_space<vmem>>, %arg3: memref<128x384xbf16, #tpu.memory_space<vmem>>, %arg4: memref<1x128xf32, #tpu.memory_space<vmem>>, %arg5: memref<8x2x128xf32, #tpu.memory_space<vmem>>, %arg6: memref<2x128xf32, #tpu.memory_space<vmem>>) attributes {dimension_semantics = [#tpu.dimension_semantics<parallel>, #tpu.dimension_semantics<arbitrary>], iteration_bounds = array<i64: 1, 1>, scalar_prefetch = 0 : i64, scratch_operands = 1 : i64, tpu.core_type = #tpu.core_type<tc>, window_params = [{transform_indices = @transform_0, window_bounds = array<i64: 8, 2, 384>}, {pipeline_mode = #tpu.pipeline_mode<synchronous>, transform_indices = @transform_1, window_bounds = array<i64: 128, 384>}, {pipeline_mode = #tpu.pipeline_mode<synchronous>, transform_indices = @transform_2, window_bounds = array<i64: 1, 128>}, {transform_indices = @transform_3, window_bounds = array<i64: 8, 2, 128>}]} {
    %c0_i32 = arith.constant 0 : i32
    %0 = arith.cmpi eq, %arg1, %c0_i32 : i32
    %1 = arith.extui %0 : i1 to i32
    %c0_i32_0 = arith.constant 0 : i32
    %2 = arith.cmpi ne, %1, %c0_i32_0 : i32
    scf.if %2 {
      %cst_64 = arith.constant 0.000000e+00 : f32
      %281 = vector.broadcast %cst_64 : f32 to vector<2x128xf32>
      %c0_65 = arith.constant 0 : index
      %c0_66 = arith.constant 0 : index
      %282 = vector.load %arg6[%c0_65, %c0_66] : memref<2x128xf32, #tpu.memory_space<vmem>>, vector<2x128xf32>
      tpu.vector_store %arg6[%c0_65, %c0_66], %281 {strides = array<i32>} : memref<2x128xf32, #tpu.memory_space<vmem>>, vector<2x128xf32>,
    } else {
    }
    %c0 = arith.constant 0 : index
    %c0_1 = arith.constant 0 : index
    %3 = vector.load %arg3[%c0, %c0_1] : memref<128x384xbf16, #tpu.memory_space<vmem>>, vector<128x384xbf16>
    %c0_2 = arith.constant 0 : index
    %c0_3 = arith.constant 0 : index
    %4 = vector.load %arg4[%c0_2, %c0_3] : memref<1x128xf32, #tpu.memory_space<vmem>>, vector<1x128xf32>
    %5 = vector.shape_cast %4 : vector<1x128xf32> to vector<1x128xf32>
    %6 = vector.broadcast %5 : vector<1x128xf32> to vector<2x128xf32>
    %c0_4 = arith.constant 0 : index
    %c0_5 = arith.constant 0 : index
    %7 = vector.load %arg6[%c0_4, %c0_5] : memref<2x128xf32, #tpu.memory_space<vmem>>, vector<2x128xf32>
    %c0_i32_6 = arith.constant 0 : i32
    %8 = arith.index_cast %c0_i32_6 : i32 to index
    %c0_7 = arith.constant 0 : index
    %c0_8 = arith.constant 0 : index
    %9 = vector.load %arg2[%8, %c0_7, %c0_8] : memref<8x2x384xf32, #tpu.memory_space<vmem>>, vector<1x2x384xf32>
    %10 = vector.shape_cast %9 : vector<1x2x384xf32> to vector<2x384xf32>
    %11 = arith.truncf %7 : vector<2x128xf32> to vector<2x128xbf16>
    %cst = arith.constant dense<0.000000e+00> : vector<2x384xf32>
    %12 = tpu.matmul %11, %3, %cst {dimension_numbers = #tpu.dot_dimension_numbers<[1], [0], [0], [1], [0, 0, 1, 1], [], []>} : vector<2x128xbf16>, vector<128x384xbf16>, vector<2x384xf32> -> vector<2x384xf32>
    %13 = vector.extract_strided_slice %10 {offsets = [0, 0], sizes = [2, 128], strides = [1, 1]} : vector<2x384xf32> to vector<2x128xf32>
    %14 = vector.extract_strided_slice %12 {offsets = [0, 0], sizes = [2, 128], strides = [1, 1]} : vector<2x384xf32> to vector<2x128xf32>
    %15 = arith.addf %13, %14 : vector<2x128xf32>
    %16 = arith.negf %15 : vector<2x128xf32>
    %17 = math.exp %16 : vector<2x128xf32>
    %cst_9 = arith.constant 1.000000e+00 : f32
    %18 = vector.broadcast %cst_9 : f32 to vector<2x128xf32>
    %19 = arith.addf %18, %17 : vector<2x128xf32>
    %20 = arith.divf %18, %19 : vector<2x128xf32>
    %21 = vector.extract_strided_slice %10 {offsets = [0, 128], sizes = [2, 128], strides = [1, 1]} : vector<2x384xf32> to vector<2x128xf32>
    %22 = vector.extract_strided_slice %12 {offsets = [0, 128], sizes = [2, 128], strides = [1, 1]} : vector<2x384xf32> to vector<2x128xf32>
    %23 = arith.addf %21, %22 : vector<2x128xf32>
    %24 = arith.negf %23 : vector<2x128xf32>
    %25 = math.exp %24 : vector<2x128xf32>
    %cst_10 = arith.constant 1.000000e+00 : f32
    %26 = vector.broadcast %cst_10 : f32 to vector<2x128xf32>
    %27 = arith.addf %26, %25 : vector<2x128xf32>
    %28 = arith.divf %26, %27 : vector<2x128xf32>
    %29 = vector.extract_strided_slice %10 {offsets = [0, 256], sizes = [2, 128], strides = [1, 1]} : vector<2x384xf32> to vector<2x128xf32>
    %30 = vector.extract_strided_slice %12 {offsets = [0, 256], sizes = [2, 128], strides = [1, 1]} : vector<2x384xf32> to vector<2x128xf32>
    %31 = arith.addf %30, %6 : vector<2x128xf32>
    %32 = arith.mulf %20, %31 : vector<2x128xf32>
    %33 = arith.addf %29, %32 : vector<2x128xf32>
    %34 = math.tanh %33 : vector<2x128xf32>
    %35 = arith.subf %7, %34 : vector<2x128xf32>
    %36 = arith.mulf %28, %35 : vector<2x128xf32>
    %37 = arith.addf %34, %36 : vector<2x128xf32>
    %38 = arith.index_cast %c0_i32_6 : i32 to index
    %c0_11 = arith.constant 0 : index
    %c0_12 = arith.constant 0 : index
    %39 = vector.load %arg5[%38, %c0_11, %c0_12] : memref<8x2x128xf32, #tpu.memory_space<vmem>>, vector<1x2x128xf32>
    %40 = vector.shape_cast %39 : vector<1x2x128xf32> to vector<2x128xf32>
    %41 = vector.shape_cast %37 : vector<2x128xf32> to vector<1x2x128xf32>
    tpu.vector_store %arg5[%38, %c0_11, %c0_12], %41 {strides = array<i32>} : memref<8x2x128xf32, #tpu.memory_space<vmem>>, vector<1x2x128xf32>,
    %c1_i32 = arith.constant 1 : i32
    %42 = arith.index_cast %c1_i32 : i32 to index
    %c0_13 = arith.constant 0 : index
    %c0_14 = arith.constant 0 : index
    %43 = vector.load %arg2[%42, %c0_13, %c0_14] : memref<8x2x384xf32, #tpu.memory_space<vmem>>, vector<1x2x384xf32>
    %44 = vector.shape_cast %43 : vector<1x2x384xf32> to vector<2x384xf32>
    %45 = arith.truncf %37 : vector<2x128xf32> to vector<2x128xbf16>
    %cst_15 = arith.constant dense<0.000000e+00> : vector<2x384xf32>
    %46 = tpu.matmul %45, %3, %cst_15 {dimension_numbers = #tpu.dot_dimension_numbers<[1], [0], [0], [1], [0, 0, 1, 1], [], []>} : vector<2x128xbf16>, vector<128x384xbf16>, vector<2x384xf32> -> vector<2x384xf32>
    %47 = vector.extract_strided_slice %44 {offsets = [0, 0], sizes = [2, 128], strides = [1, 1]} : vector<2x384xf32> to vector<2x128xf32>
    %48 = vector.extract_strided_slice %46 {offsets = [0, 0], sizes = [2, 128], strides = [1, 1]} : vector<2x384xf32> to vector<2x128xf32>
    %49 = arith.addf %47, %48 : vector<2x128xf32>
    %50 = arith.negf %49 : vector<2x128xf32>
    %51 = math.exp %50 : vector<2x128xf32>
    %cst_16 = arith.constant 1.000000e+00 : f32
    %52 = vector.broadcast %cst_16 : f32 to vector<2x128xf32>
    %53 = arith.addf %52, %51 : vector<2x128xf32>
    %54 = arith.divf %52, %53 : vector<2x128xf32>
    %55 = vector.extract_strided_slice %44 {offsets = [0, 128], sizes = [2, 128], strides = [1, 1]} : vector<2x384xf32> to vector<2x128xf32>
    %56 = vector.extract_strided_slice %46 {offsets = [0, 128], sizes = [2, 128], strides = [1, 1]} : vector<2x384xf32> to vector<2x128xf32>
    %57 = arith.addf %55, %56 : vector<2x128xf32>
    %58 = arith.negf %57 : vector<2x128xf32>
    %59 = math.exp %58 : vector<2x128xf32>
    %cst_17 = arith.constant 1.000000e+00 : f32
    %60 = vector.broadcast %cst_17 : f32 to vector<2x128xf32>
    %61 = arith.addf %60, %59 : vector<2x128xf32>
    %62 = arith.divf %60, %61 : vector<2x128xf32>
    %63 = vector.extract_strided_slice %44 {offsets = [0, 256], sizes = [2, 128], strides = [1, 1]} : vector<2x384xf32> to vector<2x128xf32>
    %64 = vector.extract_strided_slice %46 {offsets = [0, 256], sizes = [2, 128], strides = [1, 1]} : vector<2x384xf32> to vector<2x128xf32>
    %65 = arith.addf %64, %6 : vector<2x128xf32>
    %66 = arith.mulf %54, %65 : vector<2x128xf32>
    %67 = arith.addf %63, %66 : vector<2x128xf32>
    %68 = math.tanh %67 : vector<2x128xf32>
    %69 = arith.subf %37, %68 : vector<2x128xf32>
    %70 = arith.mulf %62, %69 : vector<2x128xf32>
    %71 = arith.addf %68, %70 : vector<2x128xf32>
    %72 = arith.index_cast %c1_i32 : i32 to index
    %c0_18 = arith.constant 0 : index
    %c0_19 = arith.constant 0 : index
    %73 = vector.load %arg5[%72, %c0_18, %c0_19] : memref<8x2x128xf32, #tpu.memory_space<vmem>>, vector<1x2x128xf32>
    %74 = vector.shape_cast %73 : vector<1x2x128xf32> to vector<2x128xf32>
    %75 = vector.shape_cast %71 : vector<2x128xf32> to vector<1x2x128xf32>
    tpu.vector_store %arg5[%72, %c0_18, %c0_19], %75 {strides = array<i32>} : memref<8x2x128xf32, #tpu.memory_space<vmem>>, vector<1x2x128xf32>,
    %c2_i32 = arith.constant 2 : i32
    %76 = arith.index_cast %c2_i32 : i32 to index
    %c0_20 = arith.constant 0 : index
    %c0_21 = arith.constant 0 : index
    %77 = vector.load %arg2[%76, %c0_20, %c0_21] : memref<8x2x384xf32, #tpu.memory_space<vmem>>, vector<1x2x384xf32>
    %78 = vector.shape_cast %77 : vector<1x2x384xf32> to vector<2x384xf32>
    %79 = arith.truncf %71 : vector<2x128xf32> to vector<2x128xbf16>
    %cst_22 = arith.constant dense<0.000000e+00> : vector<2x384xf32>
    %80 = tpu.matmul %79, %3, %cst_22 {dimension_numbers = #tpu.dot_dimension_numbers<[1], [0], [0], [1], [0, 0, 1, 1], [], []>} : vector<2x128xbf16>, vector<128x384xbf16>, vector<2x384xf32> -> vector<2x384xf32>
    %81 = vector.extract_strided_slice %78 {offsets = [0, 0], sizes = [2, 128], strides = [1, 1]} : vector<2x384xf32> to vector<2x128xf32>
    %82 = vector.extract_strided_slice %80 {offsets = [0, 0], sizes = [2, 128], strides = [1, 1]} : vector<2x384xf32> to vector<2x128xf32>
    %83 = arith.addf %81, %82 : vector<2x128xf32>
    %84 = arith.negf %83 : vector<2x128xf32>
    %85 = math.exp %84 : vector<2x128xf32>
    %cst_23 = arith.constant 1.000000e+00 : f32
    %86 = vector.broadcast %cst_23 : f32 to vector<2x128xf32>
    %87 = arith.addf %86, %85 : vector<2x128xf32>
    %88 = arith.divf %86, %87 : vector<2x128xf32>
    %89 = vector.extract_strided_slice %78 {offsets = [0, 128], sizes = [2, 128], strides = [1, 1]} : vector<2x384xf32> to vector<2x128xf32>
    %90 = vector.extract_strided_slice %80 {offsets = [0, 128], sizes = [2, 128], strides = [1, 1]} : vector<2x384xf32> to vector<2x128xf32>
    %91 = arith.addf %89, %90 : vector<2x128xf32>
    %92 = arith.negf %91 : vector<2x128xf32>
    %93 = math.exp %92 : vector<2x128xf32>
    %cst_24 = arith.constant 1.000000e+00 : f32
    %94 = vector.broadcast %cst_24 : f32 to vector<2x128xf32>
    %95 = arith.addf %94, %93 : vector<2x128xf32>
    %96 = arith.divf %94, %95 : vector<2x128xf32>
    %97 = vector.extract_strided_slice %78 {offsets = [0, 256], sizes = [2, 128], strides = [1, 1]} : vector<2x384xf32> to vector<2x128xf32>
    %98 = vector.extract_strided_slice %80 {offsets = [0, 256], sizes = [2, 128], strides = [1, 1]} : vector<2x384xf32> to vector<2x128xf32>
    %99 = arith.addf %98, %6 : vector<2x128xf32>
    %100 = arith.mulf %88, %99 : vector<2x128xf32>
    %101 = arith.addf %97, %100 : vector<2x128xf32>
    %102 = math.tanh %101 : vector<2x128xf32>
    %103 = arith.subf %71, %102 : vector<2x128xf32>
    %104 = arith.mulf %96, %103 : vector<2x128xf32>
    %105 = arith.addf %102, %104 : vector<2x128xf32>
    %106 = arith.index_cast %c2_i32 : i32 to index
    %c0_25 = arith.constant 0 : index
    %c0_26 = arith.constant 0 : index
    %107 = vector.load %arg5[%106, %c0_25, %c0_26] : memref<8x2x128xf32, #tpu.memory_space<vmem>>, vector<1x2x128xf32>
    %108 = vector.shape_cast %107 : vector<1x2x128xf32> to vector<2x128xf32>
    %109 = vector.shape_cast %105 : vector<2x128xf32> to vector<1x2x128xf32>
    tpu.vector_store %arg5[%106, %c0_25, %c0_26], %109 {strides = array<i32>} : memref<8x2x128xf32, #tpu.memory_space<vmem>>, vector<1x2x128xf32>,
    %c3_i32 = arith.constant 3 : i32
    %110 = arith.index_cast %c3_i32 : i32 to index
    %c0_27 = arith.constant 0 : index
    %c0_28 = arith.constant 0 : index
    %111 = vector.load %arg2[%110, %c0_27, %c0_28] : memref<8x2x384xf32, #tpu.memory_space<vmem>>, vector<1x2x384xf32>
    %112 = vector.shape_cast %111 : vector<1x2x384xf32> to vector<2x384xf32>
    %113 = arith.truncf %105 : vector<2x128xf32> to vector<2x128xbf16>
    %cst_29 = arith.constant dense<0.000000e+00> : vector<2x384xf32>
    %114 = tpu.matmul %113, %3, %cst_29 {dimension_numbers = #tpu.dot_dimension_numbers<[1], [0], [0], [1], [0, 0, 1, 1], [], []>} : vector<2x128xbf16>, vector<128x384xbf16>, vector<2x384xf32> -> vector<2x384xf32>
    %115 = vector.extract_strided_slice %112 {offsets = [0, 0], sizes = [2, 128], strides = [1, 1]} : vector<2x384xf32> to vector<2x128xf32>
    %116 = vector.extract_strided_slice %114 {offsets = [0, 0], sizes = [2, 128], strides = [1, 1]} : vector<2x384xf32> to vector<2x128xf32>
    %117 = arith.addf %115, %116 : vector<2x128xf32>
    %118 = arith.negf %117 : vector<2x128xf32>
    %119 = math.exp %118 : vector<2x128xf32>
    %cst_30 = arith.constant 1.000000e+00 : f32
    %120 = vector.broadcast %cst_30 : f32 to vector<2x128xf32>
    %121 = arith.addf %120, %119 : vector<2x128xf32>
    %122 = arith.divf %120, %121 : vector<2x128xf32>
    %123 = vector.extract_strided_slice %112 {offsets = [0, 128], sizes = [2, 128], strides = [1, 1]} : vector<2x384xf32> to vector<2x128xf32>
    %124 = vector.extract_strided_slice %114 {offsets = [0, 128], sizes = [2, 128], strides = [1, 1]} : vector<2x384xf32> to vector<2x128xf32>
    %125 = arith.addf %123, %124 : vector<2x128xf32>
    %126 = arith.negf %125 : vector<2x128xf32>
    %127 = math.exp %126 : vector<2x128xf32>
    %cst_31 = arith.constant 1.000000e+00 : f32
    %128 = vector.broadcast %cst_31 : f32 to vector<2x128xf32>
    %129 = arith.addf %128, %127 : vector<2x128xf32>
    %130 = arith.divf %128, %129 : vector<2x128xf32>
    %131 = vector.extract_strided_slice %112 {offsets = [0, 256], sizes = [2, 128], strides = [1, 1]} : vector<2x384xf32> to vector<2x128xf32>
    %132 = vector.extract_strided_slice %114 {offsets = [0, 256], sizes = [2, 128], strides = [1, 1]} : vector<2x384xf32> to vector<2x128xf32>
    %133 = arith.addf %132, %6 : vector<2x128xf32>
    %134 = arith.mulf %122, %133 : vector<2x128xf32>
    %135 = arith.addf %131, %134 : vector<2x128xf32>
    %136 = math.tanh %135 : vector<2x128xf32>
    %137 = arith.subf %105, %136 : vector<2x128xf32>
    %138 = arith.mulf %130, %137 : vector<2x128xf32>
    %139 = arith.addf %136, %138 : vector<2x128xf32>
    %140 = arith.index_cast %c3_i32 : i32 to index
    %c0_32 = arith.constant 0 : index
    %c0_33 = arith.constant 0 : index
    %141 = vector.load %arg5[%140, %c0_32, %c0_33] : memref<8x2x128xf32, #tpu.memory_space<vmem>>, vector<1x2x128xf32>
    %142 = vector.shape_cast %141 : vector<1x2x128xf32> to vector<2x128xf32>
    %143 = vector.shape_cast %139 : vector<2x128xf32> to vector<1x2x128xf32>
    tpu.vector_store %arg5[%140, %c0_32, %c0_33], %143 {strides = array<i32>} : memref<8x2x128xf32, #tpu.memory_space<vmem>>, vector<1x2x128xf32>,
    %c4_i32 = arith.constant 4 : i32
    %144 = arith.index_cast %c4_i32 : i32 to index
    %c0_34 = arith.constant 0 : index
    %c0_35 = arith.constant 0 : index
    %145 = vector.load %arg2[%144, %c0_34, %c0_35] : memref<8x2x384xf32, #tpu.memory_space<vmem>>, vector<1x2x384xf32>
    %146 = vector.shape_cast %145 : vector<1x2x384xf32> to vector<2x384xf32>
    %147 = arith.truncf %139 : vector<2x128xf32> to vector<2x128xbf16>
    %cst_36 = arith.constant dense<0.000000e+00> : vector<2x384xf32>
    %148 = tpu.matmul %147, %3, %cst_36 {dimension_numbers = #tpu.dot_dimension_numbers<[1], [0], [0], [1], [0, 0, 1, 1], [], []>} : vector<2x128xbf16>, vector<128x384xbf16>, vector<2x384xf32> -> vector<2x384xf32>
    %149 = vector.extract_strided_slice %146 {offsets = [0, 0], sizes = [2, 128], strides = [1, 1]} : vector<2x384xf32> to vector<2x128xf32>
    %150 = vector.extract_strided_slice %148 {offsets = [0, 0], sizes = [2, 128], strides = [1, 1]} : vector<2x384xf32> to vector<2x128xf32>
    %151 = arith.addf %149, %150 : vector<2x128xf32>
    %152 = arith.negf %151 : vector<2x128xf32>
    %153 = math.exp %152 : vector<2x128xf32>
    %cst_37 = arith.constant 1.000000e+00 : f32
    %154 = vector.broadcast %cst_37 : f32 to vector<2x128xf32>
    %155 = arith.addf %154, %153 : vector<2x128xf32>
    %156 = arith.divf %154, %155 : vector<2x128xf32>
    %157 = vector.extract_strided_slice %146 {offsets = [0, 128], sizes = [2, 128], strides = [1, 1]} : vector<2x384xf32> to vector<2x128xf32>
    %158 = vector.extract_strided_slice %148 {offsets = [0, 128], sizes = [2, 128], strides = [1, 1]} : vector<2x384xf32> to vector<2x128xf32>
    %159 = arith.addf %157, %158 : vector<2x128xf32>
    %160 = arith.negf %159 : vector<2x128xf32>
    %161 = math.exp %160 : vector<2x128xf32>
    %cst_38 = arith.constant 1.000000e+00 : f32
    %162 = vector.broadcast %cst_38 : f32 to vector<2x128xf32>
    %163 = arith.addf %162, %161 : vector<2x128xf32>
    %164 = arith.divf %162, %163 : vector<2x128xf32>
    %165 = vector.extract_strided_slice %146 {offsets = [0, 256], sizes = [2, 128], strides = [1, 1]} : vector<2x384xf32> to vector<2x128xf32>
    %166 = vector.extract_strided_slice %148 {offsets = [0, 256], sizes = [2, 128], strides = [1, 1]} : vector<2x384xf32> to vector<2x128xf32>
    %167 = arith.addf %166, %6 : vector<2x128xf32>
    %168 = arith.mulf %156, %167 : vector<2x128xf32>
    %169 = arith.addf %165, %168 : vector<2x128xf32>
    %170 = math.tanh %169 : vector<2x128xf32>
    %171 = arith.subf %139, %170 : vector<2x128xf32>
    %172 = arith.mulf %164, %171 : vector<2x128xf32>
    %173 = arith.addf %170, %172 : vector<2x128xf32>
    %174 = arith.index_cast %c4_i32 : i32 to index
    %c0_39 = arith.constant 0 : index
    %c0_40 = arith.constant 0 : index
    %175 = vector.load %arg5[%174, %c0_39, %c0_40] : memref<8x2x128xf32, #tpu.memory_space<vmem>>, vector<1x2x128xf32>
    %176 = vector.shape_cast %175 : vector<1x2x128xf32> to vector<2x128xf32>
    %177 = vector.shape_cast %173 : vector<2x128xf32> to vector<1x2x128xf32>
    tpu.vector_store %arg5[%174, %c0_39, %c0_40], %177 {strides = array<i32>} : memref<8x2x128xf32, #tpu.memory_space<vmem>>, vector<1x2x128xf32>,
    %c5_i32 = arith.constant 5 : i32
    %178 = arith.index_cast %c5_i32 : i32 to index
    %c0_41 = arith.constant 0 : index
    %c0_42 = arith.constant 0 : index
    %179 = vector.load %arg2[%178, %c0_41, %c0_42] : memref<8x2x384xf32, #tpu.memory_space<vmem>>, vector<1x2x384xf32>
    %180 = vector.shape_cast %179 : vector<1x2x384xf32> to vector<2x384xf32>
    %181 = arith.truncf %173 : vector<2x128xf32> to vector<2x128xbf16>
    %cst_43 = arith.constant dense<0.000000e+00> : vector<2x384xf32>
    %182 = tpu.matmul %181, %3, %cst_43 {dimension_numbers = #tpu.dot_dimension_numbers<[1], [0], [0], [1], [0, 0, 1, 1], [], []>} : vector<2x128xbf16>, vector<128x384xbf16>, vector<2x384xf32> -> vector<2x384xf32>
    %183 = vector.extract_strided_slice %180 {offsets = [0, 0], sizes = [2, 128], strides = [1, 1]} : vector<2x384xf32> to vector<2x128xf32>
    %184 = vector.extract_strided_slice %182 {offsets = [0, 0], sizes = [2, 128], strides = [1, 1]} : vector<2x384xf32> to vector<2x128xf32>
    %185 = arith.addf %183, %184 : vector<2x128xf32>
    %186 = arith.negf %185 : vector<2x128xf32>
    %187 = math.exp %186 : vector<2x128xf32>
    %cst_44 = arith.constant 1.000000e+00 : f32
    %188 = vector.broadcast %cst_44 : f32 to vector<2x128xf32>
    %189 = arith.addf %188, %187 : vector<2x128xf32>
    %190 = arith.divf %188, %189 : vector<2x128xf32>
    %191 = vector.extract_strided_slice %180 {offsets = [0, 128], sizes = [2, 128], strides = [1, 1]} : vector<2x384xf32> to vector<2x128xf32>
    %192 = vector.extract_strided_slice %182 {offsets = [0, 128], sizes = [2, 128], strides = [1, 1]} : vector<2x384xf32> to vector<2x128xf32>
    %193 = arith.addf %191, %192 : vector<2x128xf32>
    %194 = arith.negf %193 : vector<2x128xf32>
    %195 = math.exp %194 : vector<2x128xf32>
    %cst_45 = arith.constant 1.000000e+00 : f32
    %196 = vector.broadcast %cst_45 : f32 to vector<2x128xf32>
    %197 = arith.addf %196, %195 : vector<2x128xf32>
    %198 = arith.divf %196, %197 : vector<2x128xf32>
    %199 = vector.extract_strided_slice %180 {offsets = [0, 256], sizes = [2, 128], strides = [1, 1]} : vector<2x384xf32> to vector<2x128xf32>
    %200 = vector.extract_strided_slice %182 {offsets = [0, 256], sizes = [2, 128], strides = [1, 1]} : vector<2x384xf32> to vector<2x128xf32>
    %201 = arith.addf %200, %6 : vector<2x128xf32>
    %202 = arith.mulf %190, %201 : vector<2x128xf32>
    %203 = arith.addf %199, %202 : vector<2x128xf32>
    %204 = math.tanh %203 : vector<2x128xf32>
    %205 = arith.subf %173, %204 : vector<2x128xf32>
    %206 = arith.mulf %198, %205 : vector<2x128xf32>
    %207 = arith.addf %204, %206 : vector<2x128xf32>
    %208 = arith.index_cast %c5_i32 : i32 to index
    %c0_46 = arith.constant 0 : index
    %c0_47 = arith.constant 0 : index
    %209 = vector.load %arg5[%208, %c0_46, %c0_47] : memref<8x2x128xf32, #tpu.memory_space<vmem>>, vector<1x2x128xf32>
    %210 = vector.shape_cast %209 : vector<1x2x128xf32> to vector<2x128xf32>
    %211 = vector.shape_cast %207 : vector<2x128xf32> to vector<1x2x128xf32>
    tpu.vector_store %arg5[%208, %c0_46, %c0_47], %211 {strides = array<i32>} : memref<8x2x128xf32, #tpu.memory_space<vmem>>, vector<1x2x128xf32>,
    %c6_i32 = arith.constant 6 : i32
    %212 = arith.index_cast %c6_i32 : i32 to index
    %c0_48 = arith.constant 0 : index
    %c0_49 = arith.constant 0 : index
    %213 = vector.load %arg2[%212, %c0_48, %c0_49] : memref<8x2x384xf32, #tpu.memory_space<vmem>>, vector<1x2x384xf32>
    %214 = vector.shape_cast %213 : vector<1x2x384xf32> to vector<2x384xf32>
    %215 = arith.truncf %207 : vector<2x128xf32> to vector<2x128xbf16>
    %cst_50 = arith.constant dense<0.000000e+00> : vector<2x384xf32>
    %216 = tpu.matmul %215, %3, %cst_50 {dimension_numbers = #tpu.dot_dimension_numbers<[1], [0], [0], [1], [0, 0, 1, 1], [], []>} : vector<2x128xbf16>, vector<128x384xbf16>, vector<2x384xf32> -> vector<2x384xf32>
    %217 = vector.extract_strided_slice %214 {offsets = [0, 0], sizes = [2, 128], strides = [1, 1]} : vector<2x384xf32> to vector<2x128xf32>
    %218 = vector.extract_strided_slice %216 {offsets = [0, 0], sizes = [2, 128], strides = [1, 1]} : vector<2x384xf32> to vector<2x128xf32>
    %219 = arith.addf %217, %218 : vector<2x128xf32>
    %220 = arith.negf %219 : vector<2x128xf32>
    %221 = math.exp %220 : vector<2x128xf32>
    %cst_51 = arith.constant 1.000000e+00 : f32
    %222 = vector.broadcast %cst_51 : f32 to vector<2x128xf32>
    %223 = arith.addf %222, %221 : vector<2x128xf32>
    %224 = arith.divf %222, %223 : vector<2x128xf32>
    %225 = vector.extract_strided_slice %214 {offsets = [0, 128], sizes = [2, 128], strides = [1, 1]} : vector<2x384xf32> to vector<2x128xf32>
    %226 = vector.extract_strided_slice %216 {offsets = [0, 128], sizes = [2, 128], strides = [1, 1]} : vector<2x384xf32> to vector<2x128xf32>
    %227 = arith.addf %225, %226 : vector<2x128xf32>
    %228 = arith.negf %227 : vector<2x128xf32>
    %229 = math.exp %228 : vector<2x128xf32>
    %cst_52 = arith.constant 1.000000e+00 : f32
    %230 = vector.broadcast %cst_52 : f32 to vector<2x128xf32>
    %231 = arith.addf %230, %229 : vector<2x128xf32>
    %232 = arith.divf %230, %231 : vector<2x128xf32>
    %233 = vector.extract_strided_slice %214 {offsets = [0, 256], sizes = [2, 128], strides = [1, 1]} : vector<2x384xf32> to vector<2x128xf32>
    %234 = vector.extract_strided_slice %216 {offsets = [0, 256], sizes = [2, 128], strides = [1, 1]} : vector<2x384xf32> to vector<2x128xf32>
    %235 = arith.addf %234, %6 : vector<2x128xf32>
    %236 = arith.mulf %224, %235 : vector<2x128xf32>
    %237 = arith.addf %233, %236 : vector<2x128xf32>
    %238 = math.tanh %237 : vector<2x128xf32>
    %239 = arith.subf %207, %238 : vector<2x128xf32>
    %240 = arith.mulf %232, %239 : vector<2x128xf32>
    %241 = arith.addf %238, %240 : vector<2x128xf32>
    %242 = arith.index_cast %c6_i32 : i32 to index
    %c0_53 = arith.constant 0 : index
    %c0_54 = arith.constant 0 : index
    %243 = vector.load %arg5[%242, %c0_53, %c0_54] : memref<8x2x128xf32, #tpu.memory_space<vmem>>, vector<1x2x128xf32>
    %244 = vector.shape_cast %243 : vector<1x2x128xf32> to vector<2x128xf32>
    %245 = vector.shape_cast %241 : vector<2x128xf32> to vector<1x2x128xf32>
    tpu.vector_store %arg5[%242, %c0_53, %c0_54], %245 {strides = array<i32>} : memref<8x2x128xf32, #tpu.memory_space<vmem>>, vector<1x2x128xf32>,
    %c7_i32 = arith.constant 7 : i32
    %246 = arith.index_cast %c7_i32 : i32 to index
    %c0_55 = arith.constant 0 : index
    %c0_56 = arith.constant 0 : index
    %247 = vector.load %arg2[%246, %c0_55, %c0_56] : memref<8x2x384xf32, #tpu.memory_space<vmem>>, vector<1x2x384xf32>
    %248 = vector.shape_cast %247 : vector<1x2x384xf32> to vector<2x384xf32>
    %249 = arith.truncf %241 : vector<2x128xf32> to vector<2x128xbf16>
    %cst_57 = arith.constant dense<0.000000e+00> : vector<2x384xf32>
    %250 = tpu.matmul %249, %3, %cst_57 {dimension_numbers = #tpu.dot_dimension_numbers<[1], [0], [0], [1], [0, 0, 1, 1], [], []>} : vector<2x128xbf16>, vector<128x384xbf16>, vector<2x384xf32> -> vector<2x384xf32>
    %251 = vector.extract_strided_slice %248 {offsets = [0, 0], sizes = [2, 128], strides = [1, 1]} : vector<2x384xf32> to vector<2x128xf32>
    %252 = vector.extract_strided_slice %250 {offsets = [0, 0], sizes = [2, 128], strides = [1, 1]} : vector<2x384xf32> to vector<2x128xf32>
    %253 = arith.addf %251, %252 : vector<2x128xf32>
    %254 = arith.negf %253 : vector<2x128xf32>
    %255 = math.exp %254 : vector<2x128xf32>
    %cst_58 = arith.constant 1.000000e+00 : f32
    %256 = vector.broadcast %cst_58 : f32 to vector<2x128xf32>
    %257 = arith.addf %256, %255 : vector<2x128xf32>
    %258 = arith.divf %256, %257 : vector<2x128xf32>
    %259 = vector.extract_strided_slice %248 {offsets = [0, 128], sizes = [2, 128], strides = [1, 1]} : vector<2x384xf32> to vector<2x128xf32>
    %260 = vector.extract_strided_slice %250 {offsets = [0, 128], sizes = [2, 128], strides = [1, 1]} : vector<2x384xf32> to vector<2x128xf32>
    %261 = arith.addf %259, %260 : vector<2x128xf32>
    %262 = arith.negf %261 : vector<2x128xf32>
    %263 = math.exp %262 : vector<2x128xf32>
    %cst_59 = arith.constant 1.000000e+00 : f32
    %264 = vector.broadcast %cst_59 : f32 to vector<2x128xf32>
    %265 = arith.addf %264, %263 : vector<2x128xf32>
    %266 = arith.divf %264, %265 : vector<2x128xf32>
    %267 = vector.extract_strided_slice %248 {offsets = [0, 256], sizes = [2, 128], strides = [1, 1]} : vector<2x384xf32> to vector<2x128xf32>
    %268 = vector.extract_strided_slice %250 {offsets = [0, 256], sizes = [2, 128], strides = [1, 1]} : vector<2x384xf32> to vector<2x128xf32>
    %269 = arith.addf %268, %6 : vector<2x128xf32>
    %270 = arith.mulf %258, %269 : vector<2x128xf32>
    %271 = arith.addf %267, %270 : vector<2x128xf32>
    %272 = math.tanh %271 : vector<2x128xf32>
    %273 = arith.subf %241, %272 : vector<2x128xf32>
    %274 = arith.mulf %266, %273 : vector<2x128xf32>
    %275 = arith.addf %272, %274 : vector<2x128xf32>
    %276 = arith.index_cast %c7_i32 : i32 to index
    %c0_60 = arith.constant 0 : index
    %c0_61 = arith.constant 0 : index
    %277 = vector.load %arg5[%276, %c0_60, %c0_61] : memref<8x2x128xf32, #tpu.memory_space<vmem>>, vector<1x2x128xf32>
    %278 = vector.shape_cast %277 : vector<1x2x128xf32> to vector<2x128xf32>
    %279 = vector.shape_cast %275 : vector<2x128xf32> to vector<1x2x128xf32>
    tpu.vector_store %arg5[%276, %c0_60, %c0_61], %279 {strides = array<i32>} : memref<8x2x128xf32, #tpu.memory_space<vmem>>, vector<1x2x128xf32>,
    %c8_i32 = arith.constant 8 : i32
    %c0_62 = arith.constant 0 : index
    %c0_63 = arith.constant 0 : index
    %280 = vector.load %arg6[%c0_62, %c0_63] : memref<2x128xf32, #tpu.memory_space<vmem>>, vector<2x128xf32>
    tpu.vector_store %arg6[%c0_62, %c0_63], %275 {strides = array<i32>} : memref<2x128xf32, #tpu.memory_space<vmem>>, vector<2x128xf32>,
    return
  }
  func.func @transform_0(%arg0: i32, %arg1: i32) -> (i32, i32, i32) {
    %c0_i32 = arith.constant 0 : i32
    %c0_i32_0 = arith.constant 0 : i32
    return %arg1, %arg0, %c0_i32 : i32, i32, i32
  }
  func.func @transform_1(%arg0: i32, %arg1: i32) -> (i32, i32) {
    %c0_i32 = arith.constant 0 : i32
    %c0_i32_0 = arith.constant 0 : i32
    %c0_i32_1 = arith.constant 0 : i32
    return %c0_i32, %c0_i32_0 : i32, i32
  }
  func.func @transform_2(%arg0: i32, %arg1: i32) -> (i32, i32) {
    %c0_i32 = arith.constant 0 : i32
    %c0_i32_0 = arith.constant 0 : i32
    %c0_i32_1 = arith.constant 0 : i32
    return %c0_i32, %c0_i32_0 : i32, i32
  }
  func.func @transform_3(%arg0: i32, %arg1: i32) -> (i32, i32, i32) {
    %c0_i32 = arith.constant 0 : i32
    %c0_i32_0 = arith.constant 0 : i32
    return %arg1, %arg0, %c0_i32 : i32, i32, i32
  }
}

</mosaic_0001>

<llo_original>
// kernel: gru_memory_forward.1
$region0: #{gru_memory_forward.1}
  #allocation0 [shape = 'u32[]', space=smem, size = 0x4, offset = 0x4, fixed_abs, tag = 'smem constant byte address 0x4 - core index']
  #allocation1 [shape = 'u32[72,128]{1,0:T(1,128)}', space=vmem, size = 0x9000, scoped, tag = 'internal scratch']
  #allocation2 [shape = 'f32[2,128]{1,0:T(2,128)}', space=vmem, size = 0x400, scoped, tag = 'scratch operand']
  %s0 = inlined_call_operand.vmem [shape: f32[8,2,384], index: 0, kind: input, shape index: {}]
  %s1 = inlined_call_operand.vmem [shape: bf16[128,384], index: 1, kind: input, shape index: {}]
  %s2 = inlined_call_operand.vmem [shape: f32[1,128], index: 2, kind: input, shape index: {}]
  %s3 = inlined_call_operand.vmem [shape: f32[8,2,128], index: 3, kind: output, shape index: {}]
  %s4 = sld [smem:[#allocation0]]
  $region26: #{gru_memory_forward.1} parent=0
    _
  %s6 = ssub.s32 1, %s4
  %s7 = scalar_select 0, %s6, %s4
  // Predicated region
  $region2: #{gru_memory_forward.1} parent=0 // pred_check
    _
  $region3: #{gru_memory_forward.1} parent=0 // pred_check_branch
    %9 = sbr.rel (0) target = $region5
  $region4: #{gru_memory_forward.1} parent=0 // pred_region
    _
  $region5: #{gru_memory_forward.1} parent=0 // pred_fallthru
    _
  // Predicated region
  $region6: #{gru_memory_forward.1} parent=0 // pred_check
    _
  $region7: #{gru_memory_forward.1} parent=0 // pred_check_branch
    %11 = sbr.rel (0) target = $region9
  $region8: #{gru_memory_forward.1} parent=0 // pred_region
    _
  $region9: #{gru_memory_forward.1} parent=0 // pred_fallthru
    _
  // Predicated region
  $region10: #{gru_memory_forward.1} parent=0 // pred_check
    _
  $region11: #{gru_memory_forward.1} parent=0 // pred_check_branch
    %13 = sbr.rel (0) target = $region13
  $region12: #{gru_memory_forward.1} parent=0 // pred_region
    _
  $region13: #{gru_memory_forward.1} parent=0 // pred_fallthru
    _
  %p14 = scmp.eq.s32.totalorder 0, 0
  // Predicated region
  $region14: #{gru_memory_forward.1} parent=0 // pred_check
    %p15 = pneg %p14
  $region15: #{gru_memory_forward.1} parent=0 // pred_check_branch
    %17 = sbr.rel (%p15) target = $region17
  $region16: #{gru_memory_forward.1} parent=0 // pred_region
    %18 = vst [vmem:[#allocation2] sm:$0x3] 0.0
  $region17: #{gru_memory_forward.1} parent=0 // pred_fallthru
    _
  %v19 = vld [vmem:[%s1] sm:$0xff]
  %v20 = vld [vmem:[%s1 + $0x8] sm:$0xf]
  %v21 = vld [vmem:[%s1 + $0xc] sm:$0xff]
  %v22 = vld [vmem:[%s1 + $0x14] sm:$0xf]
  %v23 = vld [vmem:[%s1 + $0x18] sm:$0xff]
  %v24 = vld [vmem:[%s1 + $0x20] sm:$0xf]
  %v25 = vld [vmem:[%s1 + $0x24] sm:$0xff]
  %v26 = vld [vmem:[%s1 + $0x2c] sm:$0xf]
  %v27 = vld [vmem:[%s1 + $0x30] sm:$0xff]
  %v28 = vld [vmem:[%s1 + $0x38] sm:$0xf]
  %v29 = vld [vmem:[%s1 + $0x3c] sm:$0xff]
  %v30 = vld [vmem:[%s1 + $0x44] sm:$0xf]
  %v31 = vld [vmem:[%s1 + $0x48] sm:$0xff]
  %v32 = vld [vmem:[%s1 + $0x50] sm:$0xf]
  %v33 = vld [vmem:[%s1 + $0x54] sm:$0xff]
  %v34 = vld [vmem:[%s1 + $0x5c] sm:$0xf]
  %v35 = vld [vmem:[%s1 + $0x60] sm:$0xff]
  %v36 = vld [vmem:[%s1 + $0x68] sm:$0xf]
  %v37 = vld [vmem:[%s1 + $0x6c] sm:$0xff]
  %v38 = vld [vmem:[%s1 + $0x74] sm:$0xf]
  %v39 = vld [vmem:[%s1 + $0x78] sm:$0xff]
  %v40 = vld [vmem:[%s1 + $0x80] sm:$0xf]
  %v41 = vld [vmem:[%s1 + $0x84] sm:$0xff]
  %v42 = vld [vmem:[%s1 + $0x8c] sm:$0xf]
  %v43 = vld [vmem:[%s1 + $0x90] sm:$0xff]
  %v44 = vld [vmem:[%s1 + $0x98] sm:$0xf]
  %v45 = vld [vmem:[%s1 + $0x9c] sm:$0xff]
  %v46 = vld [vmem:[%s1 + $0xa4] sm:$0xf]
  %v47 = vld [vmem:[%s1 + $0xa8] sm:$0xff]
  %v48 = vld [vmem:[%s1 + $0xb0] sm:$0xf]
  %v49 = vld [vmem:[%s1 + $0xb4] sm:$0xff]
  %v50 = vld [vmem:[%s1 + $0xbc] sm:$0xf]
  %v51 = vld [vmem:[%s2] sm:$0x1]
  %v53 = vperm.slane %v51, 0
  %v55 = vld [vmem:[#allocation2] sm:$0x3]
  %v56 = vld [vmem:[%s0] sm:$0x3f]
  %v57 = vpack.c.bf16 %v55, %v55
  %v90 = vunpack.c.l.b16 %v19
  %v91 = vunpack.c.h.b16 %v19
  %v92 = vunpack.c.l.b16 %v20
  %v93 = vunpack.c.l.b16 %v21
  %v94 = vunpack.c.h.b16 %v21
  %v95 = vunpack.c.l.b16 %v22
  %v96 = vunpack.c.l.b16 %v23
  %v97 = vunpack.c.h.b16 %v23
  %v98 = vunpack.c.l.b16 %v24
  %v99 = vunpack.c.l.b16 %v25
  %v100 = vunpack.c.h.b16 %v25
  %v101 = vunpack.c.l.b16 %v26
  %v102 = vunpack.c.l.b16 %v27
  %v103 = vunpack.c.h.b16 %v27
  %v104 = vunpack.c.l.b16 %v28
  %v105 = vunpack.c.l.b16 %v29
  %v106 = vunpack.c.h.b16 %v29
  %v107 = vunpack.c.l.b16 %v30
  %v108 = vunpack.c.l.b16 %v31
  %v109 = vunpack.c.h.b16 %v31
  %v110 = vunpack.c.l.b16 %v32
  %v111 = vunpack.c.l.b16 %v33
  %v112 = vunpack.c.h.b16 %v33
  %v113 = vunpack.c.l.b16 %v34
  %v114 = vunpack.c.l.b16 %v35
  %v115 = vunpack.c.h.b16 %v35
  %v116 = vunpack.c.l.b16 %v36
  %v117 = vunpack.c.l.b16 %v37
  %v118 = vunpack.c.h.b16 %v37
  %v119 = vunpack.c.l.b16 %v38
  %v120 = vunpack.c.l.b16 %v39
  %v121 = vunpack.c.h.b16 %v39
  %v122 = vunpack.c.l.b16 %v40
  %v123 = vunpack.c.l.b16 %v41
  %v124 = vunpack.c.h.b16 %v41
  %v125 = vunpack.c.l.b16 %v42
  %v126 = vunpack.c.l.b16 %v43
  %v127 = vunpack.c.h.b16 %v43
  %v128 = vunpack.c.l.b16 %v44
  %v129 = vunpack.c.l.b16 %v45
  %v130 = vunpack.c.h.b16 %v45
  %v131 = vunpack.c.l.b16 %v46
  %v132 = vunpack.c.l.b16 %v47
  %v133 = vunpack.c.h.b16 %v47
  %v134 = vunpack.c.l.b16 %v48
  %v135 = vunpack.c.l.b16 %v49
  %v136 = vunpack.c.h.b16 %v49
  %v137 = vunpack.c.l.b16 %v50
  %v138 = vpack.c.b16 %v93, %v90
  %v139 = vpack.c.b16 %v94, %v91
  %v140 = vpack.c.b16 %v95, %v92
  %v141 = vpack.c.b16 %v99, %v96
  %v142 = vpack.c.b16 %v100, %v97
  %v143 = vpack.c.b16 %v101, %v98
  %v144 = vpack.c.b16 %v105, %v102
  %v145 = vpack.c.b16 %v106, %v103
  %v146 = vpack.c.b16 %v107, %v104
  %v147 = vpack.c.b16 %v111, %v108
  %v148 = vpack.c.b16 %v112, %v109
  %v149 = vpack.c.b16 %v113, %v110
  %v150 = vpack.c.b16 %v117, %v114
  %v151 = vpack.c.b16 %v118, %v115
  %v152 = vpack.c.b16 %v119, %v116
  %v153 = vpack.c.b16 %v123, %v120
  %v154 = vpack.c.b16 %v124, %v121
  %v155 = vpack.c.b16 %v125, %v122
  %v156 = vpack.c.b16 %v129, %v126
  %v157 = vpack.c.b16 %v130, %v127
  %v158 = vpack.c.b16 %v131, %v128
  %v159 = vpack.c.b16 %v135, %v132
  %v160 = vpack.c.b16 %v136, %v133
  %v161 = vpack.c.b16 %v137, %v134
  %186 = vmatpush.bf16.msra.mxu0 %v159
  %187 = vmatpush.bf16.msra.mxu0 %v156
  %188 = vmatpush.bf16.msra.mxu0 %v153
  %189 = vmatpush.bf16.msra.mxu0 %v150
  %190 = vmatpush.bf16.msra.mxu0 %v147
  %191 = vmatpush.bf16.msra.mxu0 %v144
  %192 = vmatpush.bf16.msra.mxu0 %v141
  %193 = vmatpush.bf16.msra.mxu0 %v138
  %194 = vmatmul.bf16.gmra.mxu0 %v57
  %v195 = vpop.f32.mrf.mxu0
  %v196 = vadd.f32 0.0, %v195
  %v197 = vpop.f32.mrf.mxu0
  %198 = vdwg.mxu0
  %199 = vmatpush.bf16.msra.mxu0 %v160
  %200 = vmatpush.bf16.msra.mxu0 %v157
  %201 = vmatpush.bf16.msra.mxu0 %v154
  %202 = vmatpush.bf16.msra.mxu0 %v151
  %203 = vmatpush.bf16.msra.mxu0 %v148
  %204 = vmatpush.bf16.msra.mxu0 %v145
  %205 = vmatpush.bf16.msra.mxu0 %v142
  %206 = vmatpush.bf16.msra.mxu0 %v139
  %207 = vmatmul.bf16.gmra.mxu0 %v57
  %v208 = vpop.f32.mrf.mxu0
  %v209 = vadd.f32 0.0, %v208
  %v210 = vpop.f32.mrf.mxu0
  %211 = vdwg.mxu0
  %212 = vmatpush.bf16.msra.mxu0 %v161
  %213 = vmatpush.bf16.msra.mxu0 %v158
  %214 = vmatpush.bf16.msra.mxu0 %v155
  %215 = vmatpush.bf16.msra.mxu0 %v152
  %216 = vmatpush.bf16.msra.mxu0 %v149
  %217 = vmatpush.bf16.msra.mxu0 %v146
  %218 = vmatpush.bf16.msra.mxu0 %v143
  %219 = vmatpush.bf16.msra.mxu0 %v140
  %220 = vmatmul.bf16.gmra.mxu0 %v57
  %v221 = vpop.f32.mrf.mxu0
  %v222 = vadd.f32 0.0, %v221
  %v223 = vpop.f32.mrf.mxu0
  %224 = vdwg.mxu0
  %v225 = vadd.f32 %v56, %v196
  %v226 = vxor.u32 %v225, 2147483648
  %v227 = vmul.f32 %v226, 1.442695
  %v228 = vpow.pop %v227
  %v229 = vadd.f32 %v228, 1.0
  %v230 = vrcp.pop %v229
  %v231 = vmul.f32 %v229, %v230
  %v232 = vsub.f32 1.0, %v231
  %v233 = vmul.f32 %v230, %v232
  %v234 = vadd.f32 %v230, %v233
  %vm235 = vweird.f32 %v229
  %vm236 = vweird.f32 %v230
  %vm237 = vmor %vm235, %vm236
  %v238 = vsel %vm237, %v230, %v234
  %v239 = vand.u32 2147483647, %v229
  %vm240 = vcmp.eq.f32.partialorder %v239, 8.507059e+37
  %v241 = vand.u32 %v229, 2147483648
  %v242 = vor.u32 1.1754944e-38, %v241
  %v243 = vsel %vm240, %v242, %v238
  %v244 = vmul.f32 1.0, %v243
  %v246 = vrot.slane %v56, 2
  %v248 = vadd.f32 %v246, %v209
  %v249 = vxor.u32 %v248, 2147483648
  %v250 = vmul.f32 %v249, 1.442695
  %v251 = vpow.pop %v250
  %v252 = vadd.f32 %v251, 1.0
  %v253 = vrcp.pop %v252
  %v254 = vmul.f32 %v252, %v253
  %v255 = vsub.f32 1.0, %v254
  %v256 = vmul.f32 %v253, %v255
  %v257 = vadd.f32 %v253, %v256
  %vm258 = vweird.f32 %v252
  %vm259 = vweird.f32 %v253
  %vm260 = vmor %vm258, %vm259
  %v261 = vsel %vm260, %v253, %v257
  %v262 = vand.u32 2147483647, %v252
  %vm263 = vcmp.eq.f32.partialorder %v262, 8.507059e+37
  %v264 = vand.u32 %v252, 2147483648
  %v265 = vor.u32 1.1754944e-38, %v264
  %v266 = vsel %vm263, %v265, %v261
  %v267 = vmul.f32 1.0, %v266
  %v268 = vadd.f32 %v222, %v53
  %v269 = vmul.f32 %v244, %v268
  %v270 = vrot.slane %v56, 4
  %v272 = vadd.f32 %v270, %v269
  %v273 = vtanh.pop %v272
  %v274 = vsub.f32 %v55, %v273
  %v275 = vmul.f32 %v267, %v274
  %v276 = vadd.f32 %v273, %v275
  %277 = vst [vmem:[%s3] sm:$0x3] %v276
  %s278 = scalar_lea.vmem %s0, 6
  %v279 = vld [vmem:[%s278] sm:$0x3f]
  %v280 = vpack.c.bf16 %v276, %v276
  %281 = vmatpush.bf16.msra.mxu0 %v159
  %282 = vmatpush.bf16.msra.mxu0 %v156
  %283 = vmatpush.bf16.msra.mxu0 %v153
  %284 = vmatpush.bf16.msra.mxu0 %v150
  %285 = vmatpush.bf16.msra.mxu0 %v147
  %286 = vmatpush.bf16.msra.mxu0 %v144
  %287 = vmatpush.bf16.msra.mxu0 %v141
  %288 = vmatpush.bf16.msra.mxu0 %v138
  %289 = vmatmul.bf16.gmra.mxu0 %v280
  %v290 = vpop.f32.mrf.mxu0
  %v291 = vadd.f32 0.0, %v290
  %v292 = vpop.f32.mrf.mxu0
  %293 = vdwg.mxu0
  %294 = vmatpush.bf16.msra.mxu0 %v160
  %295 = vmatpush.bf16.msra.mxu0 %v157
  %296 = vmatpush.bf16.msra.mxu0 %v154
  %297 = vmatpush.bf16.msra.mxu0 %v151
  %298 = vmatpush.bf16.msra.mxu0 %v148
  %299 = vmatpush.bf16.msra.mxu0 %v145
  %300 = vmatpush.bf16.msra.mxu0 %v142
  %301 = vmatpush.bf16.msra.mxu0 %v139
  %302 = vmatmul.bf16.gmra.mxu0 %v280
  %v303 = vpop.f32.mrf.mxu0
  %v304 = vadd.f32 0.0, %v303
  %v305 = vpop.f32.mrf.mxu0
  %306 = vdwg.mxu0
  %307 = vmatpush.bf16.msra.mxu0 %v161
  %308 = vmatpush.bf16.msra.mxu0 %v158
  %309 = vmatpush.bf16.msra.mxu0 %v155
  %310 = vmatpush.bf16.msra.mxu0 %v152
  %311 = vmatpush.bf16.msra.mxu0 %v149
  %312 = vmatpush.bf16.msra.mxu0 %v146
  %313 = vmatpush.bf16.msra.mxu0 %v143
  %314 = vmatpush.bf16.msra.mxu0 %v140
  %315 = vmatmul.bf16.gmra.mxu0 %v280
  %v316 = vpop.f32.mrf.mxu0
  %v317 = vadd.f32 0.0, %v316
  %v318 = vpop.f32.mrf.mxu0
  %319 = vdwg.mxu0
  %v320 = vadd.f32 %v279, %v291
  %v321 = vxor.u32 %v320, 2147483648
  %v322 = vmul.f32 %v321, 1.442695
  %v323 = vpow.pop %v322
  %v324 = vadd.f32 %v323, 1.0
  %v325 = vrcp.pop %v324
  %v326 = vmul.f32 %v324, %v325
  %v327 = vsub.f32 1.0, %v326
  %v328 = vmul.f32 %v325, %v327
  %v329 = vadd.f32 %v325, %v328
  %vm330 = vweird.f32 %v324
  %vm331 = vweird.f32 %v325
  %vm332 = vmor %vm330, %vm331
  %v333 = vsel %vm332, %v325, %v329
  %v334 = vand.u32 2147483647, %v324
  %vm335 = vcmp.eq.f32.partialorder %v334, 8.507059e+37
  %v336 = vand.u32 %v324, 2147483648
  %v337 = vor.u32 1.1754944e-38, %v336
  %v338 = vsel %vm335, %v337, %v333
  %v339 = vmul.f32 1.0, %v338
  %v341 = vrot.slane %v279, 2
  %v343 = vadd.f32 %v341, %v304
  %v344 = vxor.u32 %v343, 2147483648
  %v345 = vmul.f32 %v344, 1.442695
  %v346 = vpow.pop %v345
  %v347 = vadd.f32 %v346, 1.0
  %v348 = vrcp.pop %v347
  %v349 = vmul.f32 %v347, %v348
  %v350 = vsub.f32 1.0, %v349
  %v351 = vmul.f32 %v348, %v350
  %v352 = vadd.f32 %v348, %v351
  %vm353 = vweird.f32 %v347
  %vm354 = vweird.f32 %v348
  %vm355 = vmor %vm353, %vm354
  %v356 = vsel %vm355, %v348, %v352
  %v357 = vand.u32 2147483647, %v347
  %vm358 = vcmp.eq.f32.partialorder %v357, 8.507059e+37
  %v359 = vand.u32 %v347, 2147483648
  %v360 = vor.u32 1.1754944e-38, %v359
  %v361 = vsel %vm358, %v360, %v356
  %v362 = vmul.f32 1.0, %v361
  %v363 = vadd.f32 %v317, %v53
  %v364 = vmul.f32 %v339, %v363
  %v365 = vrot.slane %v279, 4
  %v367 = vadd.f32 %v365, %v364
  %v368 = vtanh.pop %v367
  %v369 = vsub.f32 %v276, %v368
  %v370 = vmul.f32 %v362, %v369
  %v371 = vadd.f32 %v368, %v370
  %s372 = scalar_lea.vmem %s3, 2
  %373 = vst [vmem:[%s372] sm:$0x3] %v371
  %s374 = scalar_lea.vmem %s0, 12
  %v375 = vld [vmem:[%s374] sm:$0x3f]
  %v376 = vpack.c.bf16 %v371, %v371
  %377 = vmatpush.bf16.msra.mxu0 %v159
  %378 = vmatpush.bf16.msra.mxu0 %v156
  %379 = vmatpush.bf16.msra.mxu0 %v153
  %380 = vmatpush.bf16.msra.mxu0 %v150
  %381 = vmatpush.bf16.msra.mxu0 %v147
  %382 = vmatpush.bf16.msra.mxu0 %v144
  %383 = vmatpush.bf16.msra.mxu0 %v141
  %384 = vmatpush.bf16.msra.mxu0 %v138
  %385 = vmatmul.bf16.gmra.mxu0 %v376
  %v386 = vpop.f32.mrf.mxu0
  %v387 = vadd.f32 0.0, %v386
  %v388 = vpop.f32.mrf.mxu0
  %389 = vdwg.mxu0
  %390 = vmatpush.bf16.msra.mxu0 %v160
  %391 = vmatpush.bf16.msra.mxu0 %v157
  %392 = vmatpush.bf16.msra.mxu0 %v154
  %393 = vmatpush.bf16.msra.mxu0 %v151
  %394 = vmatpush.bf16.msra.mxu0 %v148
  %395 = vmatpush.bf16.msra.mxu0 %v145
  %396 = vmatpush.bf16.msra.mxu0 %v142
  %397 = vmatpush.bf16.msra.mxu0 %v139
  %398 = vmatmul.bf16.gmra.mxu0 %v376
  %v399 = vpop.f32.mrf.mxu0
  %v400 = vadd.f32 0.0, %v399
  %v401 = vpop.f32.mrf.mxu0
  %402 = vdwg.mxu0
  %403 = vmatpush.bf16.msra.mxu0 %v161
  %404 = vmatpush.bf16.msra.mxu0 %v158
  %405 = vmatpush.bf16.msra.mxu0 %v155
  %406 = vmatpush.bf16.msra.mxu0 %v152
  %407 = vmatpush.bf16.msra.mxu0 %v149
  %408 = vmatpush.bf16.msra.mxu0 %v146
  %409 = vmatpush.bf16.msra.mxu0 %v143
  %410 = vmatpush.bf16.msra.mxu0 %v140
  %411 = vmatmul.bf16.gmra.mxu0 %v376
  %v412 = vpop.f32.mrf.mxu0
  %v413 = vadd.f32 0.0, %v412
  %v414 = vpop.f32.mrf.mxu0
  %415 = vdwg.mxu0
  %v416 = vadd.f32 %v375, %v387
  %v417 = vxor.u32 %v416, 2147483648
  %v418 = vmul.f32 %v417, 1.442695
  %v419 = vpow.pop %v418
  %v420 = vadd.f32 %v419, 1.0
  %v421 = vrcp.pop %v420
  %v422 = vmul.f32 %v420, %v421
  %v423 = vsub.f32 1.0, %v422
  %v424 = vmul.f32 %v421, %v423
  %v425 = vadd.f32 %v421, %v424
  %vm426 = vweird.f32 %v420
  %vm427 = vweird.f32 %v421
  %vm428 = vmor %vm426, %vm427
  %v429 = vsel %vm428, %v421, %v425
  %v430 = vand.u32 2147483647, %v420
  %vm431 = vcmp.eq.f32.partialorder %v430, 8.507059e+37
  %v432 = vand.u32 %v420, 2147483648
  %v433 = vor.u32 1.1754944e-38, %v432
  %v434 = vsel %vm431, %v433, %v429
  %v435 = vmul.f32 1.0, %v434
  %v437 = vrot.slane %v375, 2
  %v439 = vadd.f32 %v437, %v400
  %v440 = vxor.u32 %v439, 2147483648
  %v441 = vmul.f32 %v440, 1.442695
  %v442 = vpow.pop %v441
  %v443 = vadd.f32 %v442, 1.0
  %v444 = vrcp.pop %v443
  %v445 = vmul.f32 %v443, %v444
  %v446 = vsub.f32 1.0, %v445
  %v447 = vmul.f32 %v444, %v446
  %v448 = vadd.f32 %v444, %v447
  %vm449 = vweird.f32 %v443
  %vm450 = vweird.f32 %v444
  %vm451 = vmor %vm449, %vm450
  %v452 = vsel %vm451, %v444, %v448
  %v453 = vand.u32 2147483647, %v443
  %vm454 = vcmp.eq.f32.partialorder %v453, 8.507059e+37
  %v455 = vand.u32 %v443, 2147483648
  %v456 = vor.u32 1.1754944e-38, %v455
  %v457 = vsel %vm454, %v456, %v452
  %v458 = vmul.f32 1.0, %v457
  %v459 = vadd.f32 %v413, %v53
  %v460 = vmul.f32 %v435, %v459
  %v461 = vrot.slane %v375, 4
  %v463 = vadd.f32 %v461, %v460
  %v464 = vtanh.pop %v463
  %v465 = vsub.f32 %v371, %v464
  %v466 = vmul.f32 %v458, %v465
  %v467 = vadd.f32 %v464, %v466
  %s468 = scalar_lea.vmem %s3, 4
  %469 = vst [vmem:[%s468] sm:$0x3] %v467
  %s470 = scalar_lea.vmem %s0, 18
  %v471 = vld [vmem:[%s470] sm:$0x3f]
  %v472 = vpack.c.bf16 %v467, %v467
  %473 = vmatpush.bf16.msra.mxu0 %v159
  %474 = vmatpush.bf16.msra.mxu0 %v156
  %475 = vmatpush.bf16.msra.mxu0 %v153
  %476 = vmatpush.bf16.msra.mxu0 %v150
  %477 = vmatpush.bf16.msra.mxu0 %v147
  %478 = vmatpush.bf16.msra.mxu0 %v144
  %479 = vmatpush.bf16.msra.mxu0 %v141
  %480 = vmatpush.bf16.msra.mxu0 %v138
  %481 = vmatmul.bf16.gmra.mxu0 %v472
  %v482 = vpop.f32.mrf.mxu0
  %v483 = vadd.f32 0.0, %v482
  %v484 = vpop.f32.mrf.mxu0
  %485 = vdwg.mxu0
  %486 = vmatpush.bf16.msra.mxu0 %v160
  %487 = vmatpush.bf16.msra.mxu0 %v157
  %488 = vmatpush.bf16.msra.mxu0 %v154
  %489 = vmatpush.bf16.msra.mxu0 %v151
  %490 = vmatpush.bf16.msra.mxu0 %v148
  %491 = vmatpush.bf16.msra.mxu0 %v145
  %492 = vmatpush.bf16.msra.mxu0 %v142
  %493 = vmatpush.bf16.msra.mxu0 %v139
  %494 = vmatmul.bf16.gmra.mxu0 %v472
  %v495 = vpop.f32.mrf.mxu0
  %v496 = vadd.f32 0.0, %v495
  %v497 = vpop.f32.mrf.mxu0
  %498 = vdwg.mxu0
  %499 = vmatpush.bf16.msra.mxu0 %v161
  %500 = vmatpush.bf16.msra.mxu0 %v158
  %501 = vmatpush.bf16.msra.mxu0 %v155
  %502 = vmatpush.bf16.msra.mxu0 %v152
  %503 = vmatpush.bf16.msra.mxu0 %v149
  %504 = vmatpush.bf16.msra.mxu0 %v146
  %505 = vmatpush.bf16.msra.mxu0 %v143
  %506 = vmatpush.bf16.msra.mxu0 %v140
  %507 = vmatmul.bf16.gmra.mxu0 %v472
  %v508 = vpop.f32.mrf.mxu0
  %v509 = vadd.f32 0.0, %v508
  %v510 = vpop.f32.mrf.mxu0
  %511 = vdwg.mxu0
  %v512 = vadd.f32 %v471, %v483
  %v513 = vxor.u32 %v512, 2147483648
  %v514 = vmul.f32 %v513, 1.442695
  %v515 = vpow.pop %v514
  %v516 = vadd.f32 %v515, 1.0
  %v517 = vrcp.pop %v516
  %v518 = vmul.f32 %v516, %v517
  %v519 = vsub.f32 1.0, %v518
  %v520 = vmul.f32 %v517, %v519
  %v521 = vadd.f32 %v517, %v520
  %vm522 = vweird.f32 %v516
  %vm523 = vweird.f32 %v517
  %vm524 = vmor %vm522, %vm523
  %v525 = vsel %vm524, %v517, %v521
  %v526 = vand.u32 2147483647, %v516
  %vm527 = vcmp.eq.f32.partialorder %v526, 8.507059e+37
  %v528 = vand.u32 %v516, 2147483648
  %v529 = vor.u32 1.1754944e-38, %v528
  %v530 = vsel %vm527, %v529, %v525
  %v531 = vmul.f32 1.0, %v530
  %v533 = vrot.slane %v471, 2
  %v535 = vadd.f32 %v533, %v496
  %v536 = vxor.u32 %v535, 2147483648
  %v537 = vmul.f32 %v536, 1.442695
  %v538 = vpow.pop %v537
  %v539 = vadd.f32 %v538, 1.0
  %v540 = vrcp.pop %v539
  %v541 = vmul.f32 %v539, %v540
  %v542 = vsub.f32 1.0, %v541
  %v543 = vmul.f32 %v540, %v542
  %v544 = vadd.f32 %v540, %v543
  %vm545 = vweird.f32 %v539
  %vm546 = vweird.f32 %v540
  %vm547 = vmor %vm545, %vm546
  %v548 = vsel %vm547, %v540, %v544
  %v549 = vand.u32 2147483647, %v539
  %vm550 = vcmp.eq.f32.partialorder %v549, 8.507059e+37
  %v551 = vand.u32 %v539, 2147483648
  %v552 = vor.u32 1.1754944e-38, %v551
  %v553 = vsel %vm550, %v552, %v548
  %v554 = vmul.f32 1.0, %v553
  %v555 = vadd.f32 %v509, %v53
  %v556 = vmul.f32 %v531, %v555
  %v557 = vrot.slane %v471, 4
  %v559 = vadd.f32 %v557, %v556
  %v560 = vtanh.pop %v559
  %v561 = vsub.f32 %v467, %v560
  %v562 = vmul.f32 %v554, %v561
  %v563 = vadd.f32 %v560, %v562
  %s564 = scalar_lea.vmem %s3, 6
  %565 = vst [vmem:[%s564] sm:$0x3] %v563
  %s566 = scalar_lea.vmem %s0, 24
  %v567 = vld [vmem:[%s566] sm:$0x3f]
  %v568 = vpack.c.bf16 %v563, %v563
  %569 = vmatpush.bf16.msra.mxu0 %v159
  %570 = vmatpush.bf16.msra.mxu0 %v156
  %571 = vmatpush.bf16.msra.mxu0 %v153
  %572 = vmatpush.bf16.msra.mxu0 %v150
  %573 = vmatpush.bf16.msra.mxu0 %v147
  %574 = vmatpush.bf16.msra.mxu0 %v144
  %575 = vmatpush.bf16.msra.mxu0 %v141
  %576 = vmatpush.bf16.msra.mxu0 %v138
  %577 = vmatmul.bf16.gmra.mxu0 %v568
  %v578 = vpop.f32.mrf.mxu0
  %v579 = vadd.f32 0.0, %v578
  %v580 = vpop.f32.mrf.mxu0
  %581 = vdwg.mxu0
  %582 = vmatpush.bf16.msra.mxu0 %v160
  %583 = vmatpush.bf16.msra.mxu0 %v157
  %584 = vmatpush.bf16.msra.mxu0 %v154
  %585 = vmatpush.bf16.msra.mxu0 %v151
  %586 = vmatpush.bf16.msra.mxu0 %v148
  %587 = vmatpush.bf16.msra.mxu0 %v145
  %588 = vmatpush.bf16.msra.mxu0 %v142
  %589 = vmatpush.bf16.msra.mxu0 %v139
  %590 = vmatmul.bf16.gmra.mxu0 %v568
  %v591 = vpop.f32.mrf.mxu0
  %v592 = vadd.f32 0.0, %v591
  %v593 = vpop.f32.mrf.mxu0
  %594 = vdwg.mxu0
  %595 = vmatpush.bf16.msra.mxu0 %v161
  %596 = vmatpush.bf16.msra.mxu0 %v158
  %597 = vmatpush.bf16.msra.mxu0 %v155
  %598 = vmatpush.bf16.msra.mxu0 %v152
  %599 = vmatpush.bf16.msra.mxu0 %v149
  %600 = vmatpush.bf16.msra.mxu0 %v146
  %601 = vmatpush.bf16.msra.mxu0 %v143
  %602 = vmatpush.bf16.msra.mxu0 %v140
  %603 = vmatmul.bf16.gmra.mxu0 %v568
  %v604 = vpop.f32.mrf.mxu0
  %v605 = vadd.f32 0.0, %v604
  %v606 = vpop.f32.mrf.mxu0
  %607 = vdwg.mxu0
  %v608 = vadd.f32 %v567, %v579
  %v609 = vxor.u32 %v608, 2147483648
  %v610 = vmul.f32 %v609, 1.442695
  %v611 = vpow.pop %v610
  %v612 = vadd.f32 %v611, 1.0
  %v613 = vrcp.pop %v612
  %v614 = vmul.f32 %v612, %v613
  %v615 = vsub.f32 1.0, %v614
  %v616 = vmul.f32 %v613, %v615
  %v617 = vadd.f32 %v613, %v616
  %vm618 = vweird.f32 %v612
  %vm619 = vweird.f32 %v613
  %vm620 = vmor %vm618, %vm619
  %v621 = vsel %vm620, %v613, %v617
  %v622 = vand.u32 2147483647, %v612
  %vm623 = vcmp.eq.f32.partialorder %v622, 8.507059e+37
  %v624 = vand.u32 %v612, 2147483648
  %v625 = vor.u32 1.1754944e-38, %v624
  %v626 = vsel %vm623, %v625, %v621
  %v627 = vmul.f32 1.0, %v626
  %v629 = vrot.slane %v567, 2
  %v631 = vadd.f32 %v629, %v592
  %v632 = vxor.u32 %v631, 2147483648
  %v633 = vmul.f32 %v632, 1.442695
  %v634 = vpow.pop %v633
  %v635 = vadd.f32 %v634, 1.0
  %v636 = vrcp.pop %v635
  %v637 = vmul.f32 %v635, %v636
  %v638 = vsub.f32 1.0, %v637
  %v639 = vmul.f32 %v636, %v638
  %v640 = vadd.f32 %v636, %v639
  %vm641 = vweird.f32 %v635
  %vm642 = vweird.f32 %v636
  %vm643 = vmor %vm641, %vm642
  %v644 = vsel %vm643, %v636, %v640
  %v645 = vand.u32 2147483647, %v635
  %vm646 = vcmp.eq.f32.partialorder %v645, 8.507059e+37
  %v647 = vand.u32 %v635, 2147483648
  %v648 = vor.u32 1.1754944e-38, %v647
  %v649 = vsel %vm646, %v648, %v644
  %v650 = vmul.f32 1.0, %v649
  %v651 = vadd.f32 %v605, %v53
  %v652 = vmul.f32 %v627, %v651
  %v653 = vrot.slane %v567, 4
  %v655 = vadd.f32 %v653, %v652
  %v656 = vtanh.pop %v655
  %v657 = vsub.f32 %v563, %v656
  %v658 = vmul.f32 %v650, %v657
  %v659 = vadd.f32 %v656, %v658
  %s660 = scalar_lea.vmem %s3, 8
  %661 = vst [vmem:[%s660] sm:$0x3] %v659
  %s662 = scalar_lea.vmem %s0, 30
  %v663 = vld [vmem:[%s662] sm:$0x3f]
  %v664 = vpack.c.bf16 %v659, %v659
  %665 = vmatpush.bf16.msra.mxu0 %v159
  %666 = vmatpush.bf16.msra.mxu0 %v156
  %667 = vmatpush.bf16.msra.mxu0 %v153
  %668 = vmatpush.bf16.msra.mxu0 %v150
  %669 = vmatpush.bf16.msra.mxu0 %v147
  %670 = vmatpush.bf16.msra.mxu0 %v144
  %671 = vmatpush.bf16.msra.mxu0 %v141
  %672 = vmatpush.bf16.msra.mxu0 %v138
  %673 = vmatmul.bf16.gmra.mxu0 %v664
  %v674 = vpop.f32.mrf.mxu0
  %v675 = vadd.f32 0.0, %v674
  %v676 = vpop.f32.mrf.mxu0
  %677 = vdwg.mxu0
  %678 = vmatpush.bf16.msra.mxu0 %v160
  %679 = vmatpush.bf16.msra.mxu0 %v157
  %680 = vmatpush.bf16.msra.mxu0 %v154
  %681 = vmatpush.bf16.msra.mxu0 %v151
  %682 = vmatpush.bf16.msra.mxu0 %v148
  %683 = vmatpush.bf16.msra.mxu0 %v145
  %684 = vmatpush.bf16.msra.mxu0 %v142
  %685 = vmatpush.bf16.msra.mxu0 %v139
  %686 = vmatmul.bf16.gmra.mxu0 %v664
  %v687 = vpop.f32.mrf.mxu0
  %v688 = vadd.f32 0.0, %v687
  %v689 = vpop.f32.mrf.mxu0
  %690 = vdwg.mxu0
  %691 = vmatpush.bf16.msra.mxu0 %v161
  %692 = vmatpush.bf16.msra.mxu0 %v158
  %693 = vmatpush.bf16.msra.mxu0 %v155
  %694 = vmatpush.bf16.msra.mxu0 %v152
  %695 = vmatpush.bf16.msra.mxu0 %v149
  %696 = vmatpush.bf16.msra.mxu0 %v146
  %697 = vmatpush.bf16.msra.mxu0 %v143
  %698 = vmatpush.bf16.msra.mxu0 %v140
  %699 = vmatmul.bf16.gmra.mxu0 %v664
  %v700 = vpop.f32.mrf.mxu0
  %v701 = vadd.f32 0.0, %v700
  %v702 = vpop.f32.mrf.mxu0
  %703 = vdwg.mxu0
  %v704 = vadd.f32 %v663, %v675
  %v705 = vxor.u32 %v704, 2147483648
  %v706 = vmul.f32 %v705, 1.442695
  %v707 = vpow.pop %v706
  %v708 = vadd.f32 %v707, 1.0
  %v709 = vrcp.pop %v708
  %v710 = vmul.f32 %v708, %v709
  %v711 = vsub.f32 1.0, %v710
  %v712 = vmul.f32 %v709, %v711
  %v713 = vadd.f32 %v709, %v712
  %vm714 = vweird.f32 %v708
  %vm715 = vweird.f32 %v709
  %vm716 = vmor %vm714, %vm715
  %v717 = vsel %vm716, %v709, %v713
  %v718 = vand.u32 2147483647, %v708
  %vm719 = vcmp.eq.f32.partialorder %v718, 8.507059e+37
  %v720 = vand.u32 %v708, 2147483648
  %v721 = vor.u32 1.1754944e-38, %v720
  %v722 = vsel %vm719, %v721, %v717
  %v723 = vmul.f32 1.0, %v722
  %v725 = vrot.slane %v663, 2
  %v727 = vadd.f32 %v725, %v688
  %v728 = vxor.u32 %v727, 2147483648
  %v729 = vmul.f32 %v728, 1.442695
  %v730 = vpow.pop %v729
  %v731 = vadd.f32 %v730, 1.0
  %v732 = vrcp.pop %v731
  %v733 = vmul.f32 %v731, %v732
  %v734 = vsub.f32 1.0, %v733
  %v735 = vmul.f32 %v732, %v734
  %v736 = vadd.f32 %v732, %v735
  %vm737 = vweird.f32 %v731
  %vm738 = vweird.f32 %v732
  %vm739 = vmor %vm737, %vm738
  %v740 = vsel %vm739, %v732, %v736
  %v741 = vand.u32 2147483647, %v731
  %vm742 = vcmp.eq.f32.partialorder %v741, 8.507059e+37
  %v743 = vand.u32 %v731, 2147483648
  %v744 = vor.u32 1.1754944e-38, %v743
  %v745 = vsel %vm742, %v744, %v740
  %v746 = vmul.f32 1.0, %v745
  %v747 = vadd.f32 %v701, %v53
  %v748 = vmul.f32 %v723, %v747
  %v749 = vrot.slane %v663, 4
  %v751 = vadd.f32 %v749, %v748
  %v752 = vtanh.pop %v751
  %v753 = vsub.f32 %v659, %v752
  %v754 = vmul.f32 %v746, %v753
  %v755 = vadd.f32 %v752, %v754
  %s756 = scalar_lea.vmem %s3, 10
  %757 = vst [vmem:[%s756] sm:$0x3] %v755
  %s758 = scalar_lea.vmem %s0, 36
  %v759 = vld [vmem:[%s758] sm:$0x3f]
  %v760 = vpack.c.bf16 %v755, %v755
  %761 = vmatpush.bf16.msra.mxu0 %v159
  %762 = vmatpush.bf16.msra.mxu0 %v156
  %763 = vmatpush.bf16.msra.mxu0 %v153
  %764 = vmatpush.bf16.msra.mxu0 %v150
  %765 = vmatpush.bf16.msra.mxu0 %v147
  %766 = vmatpush.bf16.msra.mxu0 %v144
  %767 = vmatpush.bf16.msra.mxu0 %v141
  %768 = vmatpush.bf16.msra.mxu0 %v138
  %769 = vmatmul.bf16.gmra.mxu0 %v760
  %v770 = vpop.f32.mrf.mxu0
  %v771 = vadd.f32 0.0, %v770
  %v772 = vpop.f32.mrf.mxu0
  %773 = vdwg.mxu0
  %774 = vmatpush.bf16.msra.mxu0 %v160
  %775 = vmatpush.bf16.msra.mxu0 %v157
  %776 = vmatpush.bf16.msra.mxu0 %v154
  %777 = vmatpush.bf16.msra.mxu0 %v151
  %778 = vmatpush.bf16.msra.mxu0 %v148
  %779 = vmatpush.bf16.msra.mxu0 %v145
  %780 = vmatpush.bf16.msra.mxu0 %v142
  %781 = vmatpush.bf16.msra.mxu0 %v139
  %782 = vmatmul.bf16.gmra.mxu0 %v760
  %v783 = vpop.f32.mrf.mxu0
  %v784 = vadd.f32 0.0, %v783
  %v785 = vpop.f32.mrf.mxu0
  %786 = vdwg.mxu0
  %787 = vmatpush.bf16.msra.mxu0 %v161
  %788 = vmatpush.bf16.msra.mxu0 %v158
  %789 = vmatpush.bf16.msra.mxu0 %v155
  %790 = vmatpush.bf16.msra.mxu0 %v152
  %791 = vmatpush.bf16.msra.mxu0 %v149
  %792 = vmatpush.bf16.msra.mxu0 %v146
  %793 = vmatpush.bf16.msra.mxu0 %v143
  %794 = vmatpush.bf16.msra.mxu0 %v140
  %795 = vmatmul.bf16.gmra.mxu0 %v760
  %v796 = vpop.f32.mrf.mxu0
  %v797 = vadd.f32 0.0, %v796
  %v798 = vpop.f32.mrf.mxu0
  %799 = vdwg.mxu0
  %v800 = vadd.f32 %v759, %v771
  %v801 = vxor.u32 %v800, 2147483648
  %v802 = vmul.f32 %v801, 1.442695
  %v803 = vpow.pop %v802
  %v804 = vadd.f32 %v803, 1.0
  %v805 = vrcp.pop %v804
  %v806 = vmul.f32 %v804, %v805
  %v807 = vsub.f32 1.0, %v806
  %v808 = vmul.f32 %v805, %v807
  %v809 = vadd.f32 %v805, %v808
  %vm810 = vweird.f32 %v804
  %vm811 = vweird.f32 %v805
  %vm812 = vmor %vm810, %vm811
  %v813 = vsel %vm812, %v805, %v809
  %v814 = vand.u32 2147483647, %v804
  %vm815 = vcmp.eq.f32.partialorder %v814, 8.507059e+37
  %v816 = vand.u32 %v804, 2147483648
  %v817 = vor.u32 1.1754944e-38, %v816
  %v818 = vsel %vm815, %v817, %v813
  %v819 = vmul.f32 1.0, %v818
  %v821 = vrot.slane %v759, 2
  %v823 = vadd.f32 %v821, %v784
  %v824 = vxor.u32 %v823, 2147483648
  %v825 = vmul.f32 %v824, 1.442695
  %v826 = vpow.pop %v825
  %v827 = vadd.f32 %v826, 1.0
  %v828 = vrcp.pop %v827
  %v829 = vmul.f32 %v827, %v828
  %v830 = vsub.f32 1.0, %v829
  %v831 = vmul.f32 %v828, %v830
  %v832 = vadd.f32 %v828, %v831
  %vm833 = vweird.f32 %v827
  %vm834 = vweird.f32 %v828
  %vm835 = vmor %vm833, %vm834
  %v836 = vsel %vm835, %v828, %v832
  %v837 = vand.u32 2147483647, %v827
  %vm838 = vcmp.eq.f32.partialorder %v837, 8.507059e+37
  %v839 = vand.u32 %v827, 2147483648
  %v840 = vor.u32 1.1754944e-38, %v839
  %v841 = vsel %vm838, %v840, %v836
  %v842 = vmul.f32 1.0, %v841
  %v843 = vadd.f32 %v797, %v53
  %v844 = vmul.f32 %v819, %v843
  %v845 = vrot.slane %v759, 4
  %v847 = vadd.f32 %v845, %v844
  %v848 = vtanh.pop %v847
  %v849 = vsub.f32 %v755, %v848
  %v850 = vmul.f32 %v842, %v849
  %v851 = vadd.f32 %v848, %v850
  %s852 = scalar_lea.vmem %s3, 12
  %853 = vst [vmem:[%s852] sm:$0x3] %v851
  %s854 = scalar_lea.vmem %s0, 42
  %v855 = vld [vmem:[%s854] sm:$0x3f]
  %v856 = vpack.c.bf16 %v851, %v851
  %857 = vmatpush.bf16.msra.mxu0 %v159
  %858 = vmatpush.bf16.msra.mxu0 %v156
  %859 = vmatpush.bf16.msra.mxu0 %v153
  %860 = vmatpush.bf16.msra.mxu0 %v150
  %861 = vmatpush.bf16.msra.mxu0 %v147
  %862 = vmatpush.bf16.msra.mxu0 %v144
  %863 = vmatpush.bf16.msra.mxu0 %v141
  %864 = vmatpush.bf16.msra.mxu0 %v138
  %865 = vmatmul.bf16.gmra.mxu0 %v856
  %v866 = vpop.f32.mrf.mxu0
  %v867 = vadd.f32 0.0, %v866
  %v868 = vpop.f32.mrf.mxu0
  %869 = vdwg.mxu0
  %870 = vmatpush.bf16.msra.mxu0 %v160
  %871 = vmatpush.bf16.msra.mxu0 %v157
  %872 = vmatpush.bf16.msra.mxu0 %v154
  %873 = vmatpush.bf16.msra.mxu0 %v151
  %874 = vmatpush.bf16.msra.mxu0 %v148
  %875 = vmatpush.bf16.msra.mxu0 %v145
  %876 = vmatpush.bf16.msra.mxu0 %v142
  %877 = vmatpush.bf16.msra.mxu0 %v139
  %878 = vmatmul.bf16.gmra.mxu0 %v856
  %v879 = vpop.f32.mrf.mxu0
  %v880 = vadd.f32 0.0, %v879
  %v881 = vpop.f32.mrf.mxu0
  %882 = vdwg.mxu0
  %883 = vmatpush.bf16.msra.mxu0 %v161
  %884 = vmatpush.bf16.msra.mxu0 %v158
  %885 = vmatpush.bf16.msra.mxu0 %v155
  %886 = vmatpush.bf16.msra.mxu0 %v152
  %887 = vmatpush.bf16.msra.mxu0 %v149
  %888 = vmatpush.bf16.msra.mxu0 %v146
  %889 = vmatpush.bf16.msra.mxu0 %v143
  %890 = vmatpush.bf16.msra.mxu0 %v140
  %891 = vmatmul.bf16.gmra.mxu0 %v856
  %v892 = vpop.f32.mrf.mxu0
  %v893 = vadd.f32 0.0, %v892
  %v894 = vpop.f32.mrf.mxu0
  %895 = vdwg.mxu0
  %v896 = vadd.f32 %v855, %v867
  %v897 = vxor.u32 %v896, 2147483648
  %v898 = vmul.f32 %v897, 1.442695
  %v899 = vpow.pop %v898
  %v900 = vadd.f32 %v899, 1.0
  %v901 = vrcp.pop %v900
  %v902 = vmul.f32 %v900, %v901
  %v903 = vsub.f32 1.0, %v902
  %v904 = vmul.f32 %v901, %v903
  %v905 = vadd.f32 %v901, %v904
  %vm906 = vweird.f32 %v900
  %vm907 = vweird.f32 %v901
  %vm908 = vmor %vm906, %vm907
  %v909 = vsel %vm908, %v901, %v905
  %v910 = vand.u32 2147483647, %v900
  %vm911 = vcmp.eq.f32.partialorder %v910, 8.507059e+37
  %v912 = vand.u32 %v900, 2147483648
  %v913 = vor.u32 1.1754944e-38, %v912
  %v914 = vsel %vm911, %v913, %v909
  %v915 = vmul.f32 1.0, %v914
  %v917 = vrot.slane %v855, 2
  %v919 = vadd.f32 %v917, %v880
  %v920 = vxor.u32 %v919, 2147483648
  %v921 = vmul.f32 %v920, 1.442695
  %v922 = vpow.pop %v921
  %v923 = vadd.f32 %v922, 1.0
  %v924 = vrcp.pop %v923
  %v925 = vmul.f32 %v923, %v924
  %v926 = vsub.f32 1.0, %v925
  %v927 = vmul.f32 %v924, %v926
  %v928 = vadd.f32 %v924, %v927
  %vm929 = vweird.f32 %v923
  %vm930 = vweird.f32 %v924
  %vm931 = vmor %vm929, %vm930
  %v932 = vsel %vm931, %v924, %v928
  %v933 = vand.u32 2147483647, %v923
  %vm934 = vcmp.eq.f32.partialorder %v933, 8.507059e+37
  %v935 = vand.u32 %v923, 2147483648
  %v936 = vor.u32 1.1754944e-38, %v935
  %v937 = vsel %vm934, %v936, %v932
  %v938 = vmul.f32 1.0, %v937
  %v939 = vadd.f32 %v893, %v53
  %v940 = vmul.f32 %v915, %v939
  %v941 = vrot.slane %v855, 4
  %v943 = vadd.f32 %v941, %v940
  %v944 = vtanh.pop %v943
  %v945 = vsub.f32 %v851, %v944
  %v946 = vmul.f32 %v938, %v945
  %v947 = vadd.f32 %v944, %v946
  %s948 = scalar_lea.vmem %s3, 14
  %949 = vst [vmem:[%s948] sm:$0x3] %v947
  %950 = vst [vmem:[#allocation2] sm:$0x3] %v947
  // Predicated region
  $region18: #{gru_memory_forward.1} parent=0 // pred_check
    _
  $region19: #{gru_memory_forward.1} parent=0 // pred_check_branch
    %952 = sbr.rel (0) target = $region21
  $region20: #{gru_memory_forward.1} parent=0 // pred_region
    _
  $region21: #{gru_memory_forward.1} parent=0 // pred_fallthru
    _
  // Predicated region
  $region22: #{gru_memory_forward.1} parent=0 // pred_check
    _
  $region23: #{gru_memory_forward.1} parent=0 // pred_check_branch
    %954 = sbr.rel (0) target = $region25
  $region24: #{gru_memory_forward.1} parent=0 // pred_region
    _
  $region25: #{gru_memory_forward.1} parent=0 // pred_fallthru
    _

</llo_original>
